<compile_context>
chip_gen: v7x
topology: tpu7x:2x2x1
jax: 0.10.0
libtpu: 0.0.40
codegen_flags: <defaults>
</compile_context>

<pallas_src>
import functools

import jax
import jax.numpy as jnp
from jax.experimental import pallas as pl
from jax.experimental.pallas import tpu as pltpu


# ----------------------------------------------------------------------------
# helpers (mirror the PyTorch reference)
# ----------------------------------------------------------------------------
def _make_divisible(v, divisor, min_value=None):
    if min_value is None:
        min_value = divisor
    new_v = max(min_value, int(v + divisor / 2) // divisor * divisor)
    if new_v < 0.9 * v:
        new_v += divisor
    return new_v


def _hsig(v):
    # h_sigmoid: ReLU6(x + 3) / 6
    return jnp.clip(v + 3.0, 0.0, 6.0) * (1.0 / 6.0)


def _act(v, use_hs):
    # h_swish if use_hs else ReLU (all in f32 on the VPU)
    return v * _hsig(v) if use_hs else jnp.maximum(v, 0.0)


def _fold_bn(gamma, beta, mean, var, eps=1e-5):
    scale = gamma / jnp.sqrt(var + eps)
    bias = beta - mean * scale
    c = gamma.shape[0]
    return (scale.reshape(c, 1).astype(jnp.float32),
            bias.reshape(c, 1).astype(jnp.float32))


def _stride_selector(H, W, stride, Ho, Wo):
    # (H*W, Ho*Wo) exact 0/1 matrix selecting the stride-subsampled positions.
    src = ((stride * jnp.arange(Ho))[:, None] * W
           + (stride * jnp.arange(Wo))[None, :]).reshape(-1)
    return (jnp.arange(H * W)[:, None] == src[None, :]).astype(jnp.float32)


# ----------------------------------------------------------------------------
# fused Pallas kernel (one grid step = one image)
# ----------------------------------------------------------------------------
def _inverted_residual_kernel(*refs, expand, use_se, use_hs, identity,
                              K, stride, H, W, hidden):
    HW = H * W
    pad = (K - 1) // 2
    margin = pad * W + pad   # flat halo: covers every tap offset |dy*W + dx|

    i = 0
    x_ref = refs[i]; i += 1
    if expand:
        w1_ref, b1_ref = refs[i:i + 2]; i += 2
    wdw_ref, b2_ref = refs[i:i + 2]; i += 2
    if use_se:
        sw1_ref, sb1_ref, sw2_ref, sb2_ref = refs[i:i + 4]; i += 4
    w2_ref, b3_ref = refs[i:i + 2]; i += 2
    if stride == 2:
        sel_ref = refs[i]; i += 1
    out_ref = refs[i]; i += 1
    padbuf = refs[i]                # VMEM scratch (hidden, HW + 2*margin)

    x = x_ref[0]                    # (inp, H*W) f32, spatial on lanes

    # ---- 1x1 expand conv (BN1 scale pre-folded into weights) + bias + act ---
    if expand:
        h = jnp.dot(w1_ref[...], x.astype(jnp.bfloat16),
                    preferred_element_type=jnp.float32)          # (hidden, HW)
        h = _act(h + b1_ref[...], use_hs)
    else:
        h = x                                                    # inp == hidden

    # ---- depthwise KxK conv ('same' padding); BN2 scale folded into taps ----
    # Zero ONLY the two halo slices; the HW interior is overwritten right away.
    if margin > 0:
        padbuf[:, pl.ds(0, margin)] = jnp.zeros((hidden, margin), jnp.float32)
        padbuf[:, pl.ds(margin + HW, margin)] = jnp.zeros(
            (hidden, margin), jnp.float32)
    padbuf[:, pl.ds(margin, HW)] = h

    # K-1 reusable column-wrap masks (row wrap lands in the zero halo already,
    # so no row-bounds test is needed; correctness relies on margin >= pad*W+pad).
    lane = jax.lax.broadcasted_iota(jnp.int32, (1, HW), 1)
    col = lane % W
    colmask = {}
    for kx in range(K):
        dx = kx - pad
        if dx != 0:
            colmask[kx] = ((col + dx >= 0) & (col + dx < W)).astype(jnp.float32)

    # Group taps by column offset dx so each column mask is applied once per
    # group instead of once per tap; accumulator starts from the first group.
    acc = None
    for kx in range(K):
        dx = kx - pad
        part = None
        for ky in range(K):
            dy = ky - pad
            t = ky * K + kx
            tap = wdw_ref[:, t:t + 1]                              # (hidden, 1)
            shifted = padbuf[:, pl.ds(margin + dy * W + dx, HW)]   # halo-filled
            term = shifted * tap
            part = term if part is None else part + term
        if dx != 0:
            part = part * colmask[kx]
        acc = part if acc is None else acc + part                  # (hidden, HW)

    if stride == 2:
        # exact 0/1 selector in bf16 (exact); acc cast bf16, f32 accumulation.
        acc = jnp.dot(acc.astype(jnp.bfloat16), sel_ref[...],
                      preferred_element_type=jnp.float32)          # (hidden, HoWo)

    h = acc + b2_ref[...]                                          # BN2 bias

    if not expand:
        h = _act(h, use_hs)                                        # act before SE

    # ---- Squeeze-and-Excitation (pure VPU/XLU, no M=1 matmuls) --------------
    if use_se:
        pooled = jnp.mean(h, axis=1, keepdims=True)                # (hidden, 1)
        t1 = jnp.sum(sw1_ref[...] * pooled, axis=0, keepdims=True) + sb1_ref[...]
        t1 = jnp.maximum(t1, 0.0)                                  # (1, cr)
        t2 = jnp.sum(sw2_ref[...] * t1, axis=1, keepdims=True) + sb2_ref[...]
        h = h * _hsig(t2)                                          # channel gate

    if expand:
        h = _act(h, use_hs)                                        # act after SE

    # ---- 1x1 project conv (BN3 scale pre-folded) + bias (+ residual) --------
    y = jnp.dot(w2_ref[...], h.astype(jnp.bfloat16),
                preferred_element_type=jnp.float32)                # (oup, Ho*Wo)
    y = y + b3_ref[...]
    if identity:
        y = y + x
    out_ref[0] = y.astype(out_ref.dtype)


# ----------------------------------------------------------------------------
# one-time host-side parameter prep: fold eval-mode BN scales into conv weights
# ----------------------------------------------------------------------------
def prepare_kernel_params(p, *, expand, use_se):
    q = {}
    if expand:
        q["w_pw1"] = (p["w_pw1"].astype(jnp.float32)
                      * p["bn1_s"]).astype(jnp.bfloat16)
        q["bn1_b"] = p["bn1_b"]
    q["w_dw"] = p["w_dw"] * p["bn2_s"]           # per-channel scale x taps (f32)
    q["bn2_b"] = p["bn2_b"]
    if use_se:
        for k in ("se_w1", "se_b1", "se_w2t", "se_b2"):
            q[k] = p[k]
    q["w_pw2"] = (p["w_pw2"].astype(jnp.float32)
                  * p["bn3_s"]).astype(jnp.bfloat16)
    q["bn3_b"] = p["bn3_b"]
    return q


# ----------------------------------------------------------------------------
# wrapper
# ----------------------------------------------------------------------------
def inverted_residual_forward(x_nchw, kparams, *, inp, hidden_dim, oup,
                              kernel_size, stride, use_se, use_hs):
    B, C, H, W = x_nchw.shape
    assert C == inp and stride in (1, 2) and kernel_size % 2 == 1
    expand = inp != hidden_dim
    identity = (stride == 1) and (inp == oup)
    pad = (kernel_size - 1) // 2
    Ho = (H + 2 * pad - kernel_size) // stride + 1
    Wo = (W + 2 * pad - kernel_size) // stride + 1
    HW, HoWo = H * W, Ho * Wo
    margin = pad * W + pad
    # the zero halo must cover every flat tap offset; the kernel's depthwise
    # loop has no row-bounds mask and relies on this.
    assert margin >= pad * W + pad

    # NCHW -> (B, C, H*W): free reshape (no transpose); spatial on lanes.
    x_flat = x_nchw.reshape(B, inp, HW).astype(jnp.float32)

    def _const(arr):
        n = arr.ndim
        return pl.BlockSpec(arr.shape, lambda b, _n=n: (0,) * _n)

    inputs = [x_flat]
    in_specs = [pl.BlockSpec((1, inp, HW), lambda b: (b, 0, 0))]

    def _add(*names):
        for name in names:
            inputs.append(kparams[name])
            in_specs.append(_const(kparams[name]))

    if expand:
        _add("w_pw1", "bn1_b")
    _add("w_dw", "bn2_b")
    if use_se:
        _add("se_w1", "se_b1", "se_w2t", "se_b2")
    _add("w_pw2", "bn3_b")
    if stride == 2:
        # exact 0/1 selector, stored bf16 (exact values, half the DMA/VMEM).
        # TODO(synk): dense selector is O(HW*HoWo); replace with a row-blocked
        # depthwise formulation before running real 112x112 stride-2 shapes.
        sel = _stride_selector(H, W, stride, Ho, Wo).astype(jnp.bfloat16)
        inputs.append(sel)
        in_specs.append(_const(sel))

    kernel = functools.partial(
        _inverted_residual_kernel, expand=expand, use_se=use_se, use_hs=use_hs,
        identity=identity, K=kernel_size, stride=stride, H=H, W=W,
        hidden=hidden_dim)

    flops = 2.0 * B * (
        (hidden_dim * inp * HW if expand else 0)
        + kernel_size * kernel_size * hidden_dim * HW
        + (hidden_dim * HW * HoWo if stride == 2 else 0)
        + oup * hidden_dim * HoWo)
    bytes_accessed = (x_flat.size * 4 + B * oup * HoWo * 4
                      + B * sum(int(a.size) * a.dtype.itemsize
                                for a in inputs[1:]))

    out_flat = pl.pallas_call(
        kernel,
        grid=(B,),
        in_specs=in_specs,
        out_specs=pl.BlockSpec((1, oup, HoWo), lambda b: (b, 0, 0)),
        out_shape=jax.ShapeDtypeStruct((B, oup, HoWo), jnp.float32),
        scratch_shapes=[pltpu.VMEM((hidden_dim, HW + 2 * margin), jnp.float32)],
        compiler_params=pltpu.CompilerParams(
            dimension_semantics=("parallel",),
            # fits the v7x 64 MiB/TC budget at these shapes; re-derive before
            # scaling H*W (see TODO on spatial tiling).
            vmem_limit_bytes=32 * 1024 * 1024),
        cost_estimate=pl.CostEstimate(
            flops=int(flops), transcendentals=0,
            bytes_accessed=int(bytes_accessed)),
    )(*inputs)

    return out_flat.reshape(B, oup, Ho, Wo)   # free reshape back to NCHW


# ----------------------------------------------------------------------------
# pure-JAX reference (original unfolded math, mirrors the bf16 matmul casts)
# ----------------------------------------------------------------------------
def _reference_forward(x_nchw, p, *, inp, hidden_dim, oup, kernel_size, stride,
                       use_se, use_hs):
    B, C, H, W = x_nchw.shape
    expand = inp != hidden_dim
    identity = (stride == 1) and (inp == oup)
    pad = (kernel_size - 1) // 2
    xf = x_nchw.astype(jnp.float32)

    if expand:
        w1 = p["w_pw1"].astype(jnp.float32)
        xb = xf.astype(jnp.bfloat16).astype(jnp.float32)
        h = jnp.einsum("oi,bihw->bohw", w1, xb)
        h = _act(h * p["bn1_s"].reshape(1, -1, 1, 1)
                 + p["bn1_b"].reshape(1, -1, 1, 1), use_hs)
    else:
        h = xf

    hp = jnp.pad(h, ((0, 0), (0, 0), (pad, pad), (pad, pad)))
    Ho = (H + 2 * pad - kernel_size) // stride + 1
    Wo = (W + 2 * pad - kernel_size) // stride + 1
    wdw = p["w_dw"].reshape(hidden_dim, kernel_size, kernel_size)
    acc = jnp.zeros((B, hidden_dim, Ho, Wo), jnp.float32)
    for ky in range(kernel_size):
        for kx in range(kernel_size):
            xs = hp[:, :, ky: ky + stride * (Ho - 1) + 1: stride,
                          kx: kx + stride * (Wo - 1) + 1: stride]
            acc = acc + xs * wdw[:, ky, kx].reshape(1, -1, 1, 1)
    h = acc * p["bn2_s"].reshape(1, -1, 1, 1) + p["bn2_b"].reshape(1, -1, 1, 1)
    if not expand:
        h = _act(h, use_hs)
    if use_se:
        pooled = jnp.mean(h, axis=(2, 3))                          # (B, hidden)
        t1 = jnp.maximum(pooled @ p["se_w1"] + p["se_b1"], 0.0)    # (B, cr)
        t2 = t1 @ p["se_w2t"].T + p["se_b2"].reshape(1, -1)        # (B, hidden)
        h = h * _hsig(t2)[:, :, None, None]
    if expand:
        h = _act(h, use_hs)
    w2 = p["w_pw2"].astype(jnp.float32)
    hb = h.astype(jnp.bfloat16).astype(jnp.float32)
    y = jnp.einsum("oi,bihw->bohw", w2, hb)
    y = y * p["bn3_s"].reshape(1, -1, 1, 1) + p["bn3_b"].reshape(1, -1, 1, 1)
    if identity:
        y = y + xf
    return y


# ----------------------------------------------------------------------------
# deterministic parameter init (layouts match the PyTorch weights up to
# trivial reshapes/transposes)
# ----------------------------------------------------------------------------
def init_params(key, inp, hidden_dim, oup, kernel_size, use_se):
    ks = jax.random.split(key, 12)

    def bn(k, c):
        k1, k2, k3, k4 = jax.random.split(k, 4)
        gamma = 1.0 + 0.1 * jax.random.normal(k1, (c,), jnp.float32)
        beta = 0.1 * jax.random.normal(k2, (c,), jnp.float32)
        mean = 0.1 * jax.random.normal(k3, (c,), jnp.float32)
        var = 1.0 + 0.1 * jax.random.uniform(k4, (c,), jnp.float32)
        return _fold_bn(gamma, beta, mean, var)

    p = {}
    # expand 1x1: torch (hidden, inp, 1, 1) -> (hidden, inp), bf16 for the MXU
    p["w_pw1"] = (0.1 * jax.random.normal(ks[0], (hidden_dim, inp),
                                          jnp.float32)).astype(jnp.bfloat16)
    p["bn1_s"], p["bn1_b"] = bn(ks[1], hidden_dim)
    # depthwise: torch (hidden, 1, K, K) -> (hidden, K*K), f32 (VPU math)
    p["w_dw"] = 0.1 * jax.random.normal(
        ks[2], (hidden_dim, kernel_size * kernel_size), jnp.float32)
    p["bn2_s"], p["bn2_b"] = bn(ks[3], hidden_dim)
    # project 1x1: torch (oup, hidden, 1, 1) -> (oup, hidden), bf16
    p["w_pw2"] = (0.1 * jax.random.normal(ks[4], (oup, hidden_dim),
                                          jnp.float32)).astype(jnp.bfloat16)
    p["bn3_s"], p["bn3_b"] = bn(ks[5], oup)
    if use_se:
        cr = _make_divisible(hidden_dim // 4, 8)
        # fc1: torch weight (cr, hidden) stored transposed -> (hidden, cr)
        p["se_w1"] = 0.1 * jax.random.normal(ks[6], (hidden_dim, cr), jnp.float32)
        p["se_b1"] = 0.1 * jax.random.normal(ks[7], (1, cr), jnp.float32)
        # fc2: torch weight (hidden, cr) stored as-is -> (hidden, cr)
        p["se_w2t"] = 0.1 * jax.random.normal(ks[8], (hidden_dim, cr), jnp.float32)
        p["se_b2"] = 0.1 * jax.random.normal(ks[9], (hidden_dim, 1), jnp.float32)
    return p


# ----------------------------------------------------------------------------
if __name__ == "__main__":
    configs = [
        # InvertedResidual(8, 16, 8, k=3, s=1, SE, h-swish) -> identity path
        dict(name="expand+SE+hswish identity", B=2, H=16, W=16,
             inp=8, hidden_dim=16, oup=8, kernel_size=3, stride=1,
             use_se=True, use_hs=True),
        # InvertedResidual(16, 16, 24, k=3, s=2, no-SE, ReLU) -> non-expand, stride 2
        dict(name="no-expand relu stride2", B=2, H=16, W=16,
             inp=16, hidden_dim=16, oup=24, kernel_size=3, stride=2,
             use_se=False, use_hs=False),
    ]

    key = jax.random.PRNGKey(0)
    all_ok = True
    for cfg in configs:
        key, kx, kp = jax.random.split(key, 3)
        x = jax.random.normal(kx, (cfg["B"], cfg["inp"], cfg["H"], cfg["W"]),
                              jnp.float32)
        params = init_params(kp, cfg["inp"], cfg["hidden_dim"], cfg["oup"],
                             cfg["kernel_size"], cfg["use_se"])
        static = dict(inp=cfg["inp"], hidden_dim=cfg["hidden_dim"], oup=cfg["oup"],
                      kernel_size=cfg["kernel_size"], stride=cfg["stride"],
                      use_se=cfg["use_se"], use_hs=cfg["use_hs"])

        # one-time host-side BN-scale folding (not per-call work)
        expand = cfg["inp"] != cfg["hidden_dim"]
        kparams = prepare_kernel_params(params, expand=expand,
                                        use_se=cfg["use_se"])

        fwd = jax.jit(functools.partial(inverted_residual_forward, **static))
        out = fwd(x, kparams)
        jax.block_until_ready(out)

        ref = _reference_forward(x, params, **static)
        pad = (cfg["kernel_size"] - 1) // 2
        Ho = (cfg["H"] + 2 * pad - cfg["kernel_size"]) // cfg["stride"] + 1
        Wo = (cfg["W"] + 2 * pad - cfg["kernel_size"]) // cfg["stride"] + 1
        assert out.shape == (cfg["B"], cfg["oup"], Ho, Wo)
        assert out.dtype == jnp.float32

        err = float(jnp.max(jnp.abs(out - ref)))
        # tolerance covers bf16 rounding of the BN-folded 1x1 weights and the
        # bf16 selection matmul; real bugs show up as O(0.1 - 1) errors.
        if not (err < 2e-2):
            all_ok = False
            print(f"FAIL {cfg['name']}: max abs err = {err:.3e}")

    if all_ok:
        print("KERNEL_OK")
</pallas_src>

<mosaic_0001>
module attributes {stable_mosaic.version = 11 : i64} {
  func.func @_inverted_residual_kernel(%arg0: i32, %arg1: memref<1x8x256xf32, #tpu.memory_space<vmem>>, %arg2: memref<16x8xbf16, #tpu.memory_space<vmem>>, %arg3: memref<16x1xf32, #tpu.memory_space<vmem>>, %arg4: memref<16x9xf32, #tpu.memory_space<vmem>>, %arg5: memref<16x1xf32, #tpu.memory_space<vmem>>, %arg6: memref<16x8xf32, #tpu.memory_space<vmem>>, %arg7: memref<1x8xf32, #tpu.memory_space<vmem>>, %arg8: memref<16x8xf32, #tpu.memory_space<vmem>>, %arg9: memref<16x1xf32, #tpu.memory_space<vmem>>, %arg10: memref<8x16xbf16, #tpu.memory_space<vmem>>, %arg11: memref<8x1xf32, #tpu.memory_space<vmem>>, %arg12: memref<1x8x256xf32, #tpu.memory_space<vmem>>, %arg13: memref<16x290xf32, #tpu.memory_space<vmem>>) attributes {dimension_semantics = [#tpu.dimension_semantics<parallel>], iteration_bounds = array<i64: 2>, scalar_prefetch = 0 : i64, scratch_operands = 1 : i64, tpu.core_type = #tpu.core_type<tc>, window_params = [{transform_indices = @transform_0, window_bounds = array<i64: 1, 8, 256>}, {pipeline_mode = #tpu.pipeline_mode<synchronous>, transform_indices = @transform_1, window_bounds = array<i64: 16, 8>}, {pipeline_mode = #tpu.pipeline_mode<synchronous>, transform_indices = @transform_2, window_bounds = array<i64: 16, 1>}, {pipeline_mode = #tpu.pipeline_mode<synchronous>, transform_indices = @transform_3, window_bounds = array<i64: 16, 9>}, {pipeline_mode = #tpu.pipeline_mode<synchronous>, transform_indices = @transform_4, window_bounds = array<i64: 16, 1>}, {pipeline_mode = #tpu.pipeline_mode<synchronous>, transform_indices = @transform_5, window_bounds = array<i64: 16, 8>}, {pipeline_mode = #tpu.pipeline_mode<synchronous>, transform_indices = @transform_6, window_bounds = array<i64: 1, 8>}, {pipeline_mode = #tpu.pipeline_mode<synchronous>, transform_indices = @transform_7, window_bounds = array<i64: 16, 8>}, {pipeline_mode = #tpu.pipeline_mode<synchronous>, transform_indices = @transform_8, window_bounds = array<i64: 16, 1>}, {pipeline_mode = #tpu.pipeline_mode<synchronous>, transform_indices = @transform_9, window_bounds = array<i64: 8, 16>}, {pipeline_mode = #tpu.pipeline_mode<synchronous>, transform_indices = @transform_10, window_bounds = array<i64: 8, 1>}, {transform_indices = @transform_11, window_bounds = array<i64: 1, 8, 256>}]} {
    %c0 = arith.constant 0 : index
    %c0_0 = arith.constant 0 : index
    %c0_1 = arith.constant 0 : index
    %0 = vector.load %arg1[%c0, %c0_0, %c0_1] : memref<1x8x256xf32, #tpu.memory_space<vmem>>, vector<1x8x256xf32>
    %1 = vector.shape_cast %0 : vector<1x8x256xf32> to vector<8x256xf32>
    %c0_2 = arith.constant 0 : index
    %c0_3 = arith.constant 0 : index
    %2 = vector.load %arg2[%c0_2, %c0_3] : memref<16x8xbf16, #tpu.memory_space<vmem>>, vector<16x8xbf16>
    %3 = arith.truncf %1 : vector<8x256xf32> to vector<8x256xbf16>
    %cst = arith.constant dense<0.000000e+00> : vector<16x256xf32>
    %4 = tpu.matmul %2, %3, %cst {dimension_numbers = #tpu.dot_dimension_numbers<[1], [0], [0], [1], [0, 0, 1, 1], [], []>} : vector<16x8xbf16>, vector<8x256xbf16>, vector<16x256xf32> -> vector<16x256xf32>
    %c0_4 = arith.constant 0 : index
    %c0_5 = arith.constant 0 : index
    %5 = vector.load %arg3[%c0_4, %c0_5] : memref<16x1xf32, #tpu.memory_space<vmem>>, vector<16x1xf32>
    %6 = vector.broadcast %5 : vector<16x1xf32> to vector<16x256xf32>
    %7 = arith.addf %4, %6 : vector<16x256xf32>
    %cst_6 = arith.constant 3.000000e+00 : f32
    %8 = vector.broadcast %cst_6 : f32 to vector<16x256xf32>
    %9 = arith.addf %7, %8 : vector<16x256xf32>
    %cst_7 = arith.constant 0.000000e+00 : f32
    %cst_8 = arith.constant 6.000000e+00 : f32
    %10 = vector.broadcast %cst_7 : f32 to vector<16x256xf32>
    %11 = arith.maximumf %10, %9 : vector<16x256xf32>
    %12 = vector.broadcast %cst_8 : f32 to vector<16x256xf32>
    %13 = arith.minimumf %12, %11 : vector<16x256xf32>
    %cst_9 = arith.constant 0.166666672 : f32
    %14 = vector.broadcast %cst_9 : f32 to vector<16x256xf32>
    %15 = arith.mulf %13, %14 : vector<16x256xf32>
    %16 = arith.mulf %7, %15 : vector<16x256xf32>
    %cst_10 = arith.constant 0.000000e+00 : f32
    %17 = vector.broadcast %cst_10 : f32 to vector<16x17xf32>
    %c0_11 = arith.constant 0 : index
    %c0_12 = arith.constant 0 : index
    %18 = vector.load %arg13[%c0_11, %c0_12] : memref<16x290xf32, #tpu.memory_space<vmem>>, vector<16x17xf32>
    tpu.vector_store %arg13[%c0_11, %c0_12], %17 {strides = array<i32>} : memref<16x290xf32, #tpu.memory_space<vmem>>, vector<16x17xf32>,
    %cst_13 = arith.constant 0.000000e+00 : f32
    %19 = vector.broadcast %cst_13 : f32 to vector<16x17xf32>
    %c0_14 = arith.constant 0 : index
    %c273 = arith.constant 273 : index
    %20 = vector.load %arg13[%c0_14, %c273] : memref<16x290xf32, #tpu.memory_space<vmem>>, vector<16x17xf32>
    tpu.vector_store %arg13[%c0_14, %c273], %19 {strides = array<i32>} : memref<16x290xf32, #tpu.memory_space<vmem>>, vector<16x17xf32>,
    %c0_15 = arith.constant 0 : index
    %c17 = arith.constant 17 : index
    %21 = vector.load %arg13[%c0_15, %c17] : memref<16x290xf32, #tpu.memory_space<vmem>>, vector<16x256xf32>
    tpu.vector_store %arg13[%c0_15, %c17], %16 {strides = array<i32>} : memref<16x290xf32, #tpu.memory_space<vmem>>, vector<16x256xf32>,
    %22 = tpu.iota {dimensions = array<i32: 1>} : vector<1x256xi32>
    %c16_i32 = arith.constant 16 : i32
    %c0_i32 = arith.constant 0 : i32
    %23 = arith.cmpi eq, %c16_i32, %c0_i32 : i32
    %c1_i32 = arith.constant 1 : i32
    %24 = arith.select %23, %c1_i32, %c16_i32 : i32
    %25 = vector.broadcast %24 : i32 to vector<1x256xi32>
    %26 = arith.remsi %22, %25 : vector<1x256xi32>
    %c0_i32_16 = arith.constant 0 : i32
    %27 = vector.broadcast %c0_i32_16 : i32 to vector<1x256xi32>
    %28 = arith.cmpi ne, %26, %27 : vector<1x256xi32>
    %c0_i32_17 = arith.constant 0 : i32
    %29 = vector.broadcast %c0_i32_17 : i32 to vector<1x256xi32>
    %30 = arith.cmpi slt, %26, %29 : vector<1x256xi32>
    %c0_i32_18 = arith.constant 0 : i32
    %31 = arith.cmpi slt, %24, %c0_i32_18 : i32
    %32 = vector.broadcast %31 : i1 to vector<1x256xi1>
    %33 = vector.broadcast %32 : vector<1x256xi1> to vector<1x256xi1>
    %34 = arith.xori %30, %33 : vector<1x256xi1>
    %35 = arith.andi %34, %28 : vector<1x256xi1>
    %36 = vector.broadcast %24 : i32 to vector<1x256xi32>
    %37 = arith.addi %26, %36 : vector<1x256xi32>
    %38 = arith.select %35, %37, %26 : vector<1x256xi1>, vector<1x256xi32>
    %c-1_i32 = arith.constant -1 : i32
    %39 = vector.broadcast %c-1_i32 : i32 to vector<1x256xi32>
    %40 = arith.addi %38, %39 : vector<1x256xi32>
    %c0_i32_19 = arith.constant 0 : i32
    %41 = vector.broadcast %c0_i32_19 : i32 to vector<1x256xi32>
    %42 = arith.cmpi sge, %40, %41 : vector<1x256xi32>
    %c-1_i32_20 = arith.constant -1 : i32
    %43 = vector.broadcast %c-1_i32_20 : i32 to vector<1x256xi32>
    %44 = arith.addi %38, %43 : vector<1x256xi32>
    %c16_i32_21 = arith.constant 16 : i32
    %45 = vector.broadcast %c16_i32_21 : i32 to vector<1x256xi32>
    %46 = arith.cmpi slt, %44, %45 : vector<1x256xi32>
    %47 = arith.andi %42, %46 : vector<1x256xi1>
    %48 = arith.extui %47 : vector<1x256xi1> to vector<1x256xi32>
    %49 = arith.sitofp %48 : vector<1x256xi32> to vector<1x256xf32>
    %c1_i32_22 = arith.constant 1 : i32
    %50 = vector.broadcast %c1_i32_22 : i32 to vector<1x256xi32>
    %51 = arith.addi %38, %50 : vector<1x256xi32>
    %c0_i32_23 = arith.constant 0 : i32
    %52 = vector.broadcast %c0_i32_23 : i32 to vector<1x256xi32>
    %53 = arith.cmpi sge, %51, %52 : vector<1x256xi32>
    %c1_i32_24 = arith.constant 1 : i32
    %54 = vector.broadcast %c1_i32_24 : i32 to vector<1x256xi32>
    %55 = arith.addi %38, %54 : vector<1x256xi32>
    %c16_i32_25 = arith.constant 16 : i32
    %56 = vector.broadcast %c16_i32_25 : i32 to vector<1x256xi32>
    %57 = arith.cmpi slt, %55, %56 : vector<1x256xi32>
    %58 = arith.andi %53, %57 : vector<1x256xi1>
    %59 = arith.extui %58 : vector<1x256xi1> to vector<1x256xi32>
    %60 = arith.sitofp %59 : vector<1x256xi32> to vector<1x256xf32>
    %c0_26 = arith.constant 0 : index
    %c0_27 = arith.constant 0 : index
    %61 = vector.load %arg4[%c0_26, %c0_27] : memref<16x9xf32, #tpu.memory_space<vmem>>, vector<16x1xf32>
    %c0_28 = arith.constant 0 : index
    %c0_29 = arith.constant 0 : index
    %62 = vector.load %arg13[%c0_28, %c0_29] : memref<16x290xf32, #tpu.memory_space<vmem>>, vector<16x256xf32>
    %63 = vector.broadcast %61 : vector<16x1xf32> to vector<16x256xf32>
    %64 = arith.mulf %62, %63 : vector<16x256xf32>
    %c0_30 = arith.constant 0 : index
    %c3 = arith.constant 3 : index
    %65 = vector.load %arg4[%c0_30, %c3] : memref<16x9xf32, #tpu.memory_space<vmem>>, vector<16x1xf32>
    %c0_31 = arith.constant 0 : index
    %c16 = arith.constant 16 : index
    %66 = vector.load %arg13[%c0_31, %c16] : memref<16x290xf32, #tpu.memory_space<vmem>>, vector<16x256xf32>
    %67 = vector.broadcast %65 : vector<16x1xf32> to vector<16x256xf32>
    %68 = arith.mulf %66, %67 : vector<16x256xf32>
    %69 = arith.addf %64, %68 : vector<16x256xf32>
    %c0_32 = arith.constant 0 : index
    %c6 = arith.constant 6 : index
    %70 = vector.load %arg4[%c0_32, %c6] : memref<16x9xf32, #tpu.memory_space<vmem>>, vector<16x1xf32>
    %c0_33 = arith.constant 0 : index
    %c32 = arith.constant 32 : index
    %71 = vector.load %arg13[%c0_33, %c32] : memref<16x290xf32, #tpu.memory_space<vmem>>, vector<16x256xf32>
    %72 = vector.broadcast %70 : vector<16x1xf32> to vector<16x256xf32>
    %73 = arith.mulf %71, %72 : vector<16x256xf32>
    %74 = arith.addf %69, %73 : vector<16x256xf32>
    %75 = vector.broadcast %49 : vector<1x256xf32> to vector<16x256xf32>
    %76 = arith.mulf %74, %75 : vector<16x256xf32>
    %c0_34 = arith.constant 0 : index
    %c1 = arith.constant 1 : index
    %77 = vector.load %arg4[%c0_34, %c1] : memref<16x9xf32, #tpu.memory_space<vmem>>, vector<16x1xf32>
    %c0_35 = arith.constant 0 : index
    %c1_36 = arith.constant 1 : index
    %78 = vector.load %arg13[%c0_35, %c1_36] : memref<16x290xf32, #tpu.memory_space<vmem>>, vector<16x256xf32>
    %79 = vector.broadcast %77 : vector<16x1xf32> to vector<16x256xf32>
    %80 = arith.mulf %78, %79 : vector<16x256xf32>
    %c0_37 = arith.constant 0 : index
    %c4 = arith.constant 4 : index
    %81 = vector.load %arg4[%c0_37, %c4] : memref<16x9xf32, #tpu.memory_space<vmem>>, vector<16x1xf32>
    %c0_38 = arith.constant 0 : index
    %c17_39 = arith.constant 17 : index
    %82 = vector.load %arg13[%c0_38, %c17_39] : memref<16x290xf32, #tpu.memory_space<vmem>>, vector<16x256xf32>
    %83 = vector.broadcast %81 : vector<16x1xf32> to vector<16x256xf32>
    %84 = arith.mulf %82, %83 : vector<16x256xf32>
    %85 = arith.addf %80, %84 : vector<16x256xf32>
    %c0_40 = arith.constant 0 : index
    %c7 = arith.constant 7 : index
    %86 = vector.load %arg4[%c0_40, %c7] : memref<16x9xf32, #tpu.memory_space<vmem>>, vector<16x1xf32>
    %c0_41 = arith.constant 0 : index
    %c33 = arith.constant 33 : index
    %87 = vector.load %arg13[%c0_41, %c33] : memref<16x290xf32, #tpu.memory_space<vmem>>, vector<16x256xf32>
    %88 = vector.broadcast %86 : vector<16x1xf32> to vector<16x256xf32>
    %89 = arith.mulf %87, %88 : vector<16x256xf32>
    %90 = arith.addf %85, %89 : vector<16x256xf32>
    %91 = arith.addf %76, %90 : vector<16x256xf32>
    %c0_42 = arith.constant 0 : index
    %c2 = arith.constant 2 : index
    %92 = vector.load %arg4[%c0_42, %c2] : memref<16x9xf32, #tpu.memory_space<vmem>>, vector<16x1xf32>
    %c0_43 = arith.constant 0 : index
    %c2_44 = arith.constant 2 : index
    %93 = vector.load %arg13[%c0_43, %c2_44] : memref<16x290xf32, #tpu.memory_space<vmem>>, vector<16x256xf32>
    %94 = vector.broadcast %92 : vector<16x1xf32> to vector<16x256xf32>
    %95 = arith.mulf %93, %94 : vector<16x256xf32>
    %c0_45 = arith.constant 0 : index
    %c5 = arith.constant 5 : index
    %96 = vector.load %arg4[%c0_45, %c5] : memref<16x9xf32, #tpu.memory_space<vmem>>, vector<16x1xf32>
    %c0_46 = arith.constant 0 : index
    %c18 = arith.constant 18 : index
    %97 = vector.load %arg13[%c0_46, %c18] : memref<16x290xf32, #tpu.memory_space<vmem>>, vector<16x256xf32>
    %98 = vector.broadcast %96 : vector<16x1xf32> to vector<16x256xf32>
    %99 = arith.mulf %97, %98 : vector<16x256xf32>
    %100 = arith.addf %95, %99 : vector<16x256xf32>
    %c0_47 = arith.constant 0 : index
    %c8 = arith.constant 8 : index
    %101 = vector.load %arg4[%c0_47, %c8] : memref<16x9xf32, #tpu.memory_space<vmem>>, vector<16x1xf32>
    %c0_48 = arith.constant 0 : index
    %c34 = arith.constant 34 : index
    %102 = vector.load %arg13[%c0_48, %c34] : memref<16x290xf32, #tpu.memory_space<vmem>>, vector<16x256xf32>
    %103 = vector.broadcast %101 : vector<16x1xf32> to vector<16x256xf32>
    %104 = arith.mulf %102, %103 : vector<16x256xf32>
    %105 = arith.addf %100, %104 : vector<16x256xf32>
    %106 = vector.broadcast %60 : vector<1x256xf32> to vector<16x256xf32>
    %107 = arith.mulf %105, %106 : vector<16x256xf32>
    %108 = arith.addf %91, %107 : vector<16x256xf32>
    %c0_49 = arith.constant 0 : index
    %c0_50 = arith.constant 0 : index
    %109 = vector.load %arg5[%c0_49, %c0_50] : memref<16x1xf32, #tpu.memory_space<vmem>>, vector<16x1xf32>
    %110 = vector.broadcast %109 : vector<16x1xf32> to vector<16x256xf32>
    %111 = arith.addf %108, %110 : vector<16x256xf32>
    %cst_51 = arith.constant dense<0.000000e+00> : vector<16xf32>
    %112 = vector.multi_reduction <add>, %111, %cst_51 [1] : vector<16x256xf32> to vector<16xf32>
    %113 = vector.shape_cast %112 : vector<16xf32> to vector<16x1xf32>
    %cst_52 = arith.constant 2.560000e+02 : f32
    %114 = vector.broadcast %cst_52 : f32 to vector<16x1xf32>
    %115 = arith.divf %113, %114 : vector<16x1xf32>
    %c0_53 = arith.constant 0 : index
    %c0_54 = arith.constant 0 : index
    %116 = vector.load %arg6[%c0_53, %c0_54] : memref<16x8xf32, #tpu.memory_space<vmem>>, vector<16x8xf32>
    %117 = vector.broadcast %115 : vector<16x1xf32> to vector<16x8xf32>
    %118 = arith.mulf %116, %117 : vector<16x8xf32>
    %cst_55 = arith.constant dense<0.000000e+00> : vector<8xf32>
    %119 = vector.multi_reduction <add>, %118, %cst_55 [0] : vector<16x8xf32> to vector<8xf32>
    %120 = vector.shape_cast %119 : vector<8xf32> to vector<1x8xf32>
    %c0_56 = arith.constant 0 : index
    %c0_57 = arith.constant 0 : index
    %121 = vector.load %arg7[%c0_56, %c0_57] : memref<1x8xf32, #tpu.memory_space<vmem>>, vector<1x8xf32>
    %122 = arith.addf %120, %121 : vector<1x8xf32>
    %cst_58 = arith.constant 0.000000e+00 : f32
    %123 = vector.broadcast %cst_58 : f32 to vector<1x8xf32>
    %124 = arith.maximumf %122, %123 : vector<1x8xf32>
    %c0_59 = arith.constant 0 : index
    %c0_60 = arith.constant 0 : index
    %125 = vector.load %arg8[%c0_59, %c0_60] : memref<16x8xf32, #tpu.memory_space<vmem>>, vector<16x8xf32>
    %126 = vector.broadcast %124 : vector<1x8xf32> to vector<16x8xf32>
    %127 = arith.mulf %125, %126 : vector<16x8xf32>
    %cst_61 = arith.constant dense<0.000000e+00> : vector<16xf32>
    %128 = vector.multi_reduction <add>, %127, %cst_61 [1] : vector<16x8xf32> to vector<16xf32>
    %129 = vector.shape_cast %128 : vector<16xf32> to vector<16x1xf32>
    %c0_62 = arith.constant 0 : index
    %c0_63 = arith.constant 0 : index
    %130 = vector.load %arg9[%c0_62, %c0_63] : memref<16x1xf32, #tpu.memory_space<vmem>>, vector<16x1xf32>
    %131 = arith.addf %129, %130 : vector<16x1xf32>
    %cst_64 = arith.constant 3.000000e+00 : f32
    %132 = vector.broadcast %cst_64 : f32 to vector<16x1xf32>
    %133 = arith.addf %131, %132 : vector<16x1xf32>
    %cst_65 = arith.constant 0.000000e+00 : f32
    %cst_66 = arith.constant 6.000000e+00 : f32
    %134 = vector.broadcast %cst_65 : f32 to vector<16x1xf32>
    %135 = arith.maximumf %134, %133 : vector<16x1xf32>
    %136 = vector.broadcast %cst_66 : f32 to vector<16x1xf32>
    %137 = arith.minimumf %136, %135 : vector<16x1xf32>
    %cst_67 = arith.constant 0.166666672 : f32
    %138 = vector.broadcast %cst_67 : f32 to vector<16x1xf32>
    %139 = arith.mulf %137, %138 : vector<16x1xf32>
    %140 = vector.broadcast %139 : vector<16x1xf32> to vector<16x256xf32>
    %141 = arith.mulf %111, %140 : vector<16x256xf32>
    %cst_68 = arith.constant 3.000000e+00 : f32
    %142 = vector.broadcast %cst_68 : f32 to vector<16x256xf32>
    %143 = arith.addf %141, %142 : vector<16x256xf32>
    %cst_69 = arith.constant 0.000000e+00 : f32
    %cst_70 = arith.constant 6.000000e+00 : f32
    %144 = vector.broadcast %cst_69 : f32 to vector<16x256xf32>
    %145 = arith.maximumf %144, %143 : vector<16x256xf32>
    %146 = vector.broadcast %cst_70 : f32 to vector<16x256xf32>
    %147 = arith.minimumf %146, %145 : vector<16x256xf32>
    %cst_71 = arith.constant 0.166666672 : f32
    %148 = vector.broadcast %cst_71 : f32 to vector<16x256xf32>
    %149 = arith.mulf %147, %148 : vector<16x256xf32>
    %150 = arith.mulf %141, %149 : vector<16x256xf32>
    %c0_72 = arith.constant 0 : index
    %c0_73 = arith.constant 0 : index
    %151 = vector.load %arg10[%c0_72, %c0_73] : memref<8x16xbf16, #tpu.memory_space<vmem>>, vector<8x16xbf16>
    %152 = arith.truncf %150 : vector<16x256xf32> to vector<16x256xbf16>
    %cst_74 = arith.constant dense<0.000000e+00> : vector<8x256xf32>
    %153 = tpu.matmul %151, %152, %cst_74 {dimension_numbers = #tpu.dot_dimension_numbers<[1], [0], [0], [1], [0, 0, 1, 1], [], []>} : vector<8x16xbf16>, vector<16x256xbf16>, vector<8x256xf32> -> vector<8x256xf32>
    %c0_75 = arith.constant 0 : index
    %c0_76 = arith.constant 0 : index
    %154 = vector.load %arg11[%c0_75, %c0_76] : memref<8x1xf32, #tpu.memory_space<vmem>>, vector<8x1xf32>
    %155 = vector.broadcast %154 : vector<8x1xf32> to vector<8x256xf32>
    %156 = arith.addf %153, %155 : vector<8x256xf32>
    %157 = arith.addf %156, %1 : vector<8x256xf32>
    %c0_77 = arith.constant 0 : index
    %c0_78 = arith.constant 0 : index
    %c0_79 = arith.constant 0 : index
    %158 = vector.load %arg12[%c0_77, %c0_78, %c0_79] : memref<1x8x256xf32, #tpu.memory_space<vmem>>, vector<1x8x256xf32>
    %159 = vector.shape_cast %158 : vector<1x8x256xf32> to vector<8x256xf32>
    %160 = vector.shape_cast %157 : vector<8x256xf32> to vector<1x8x256xf32>
    tpu.vector_store %arg12[%c0_77, %c0_78, %c0_79], %160 {strides = array<i32>} : memref<1x8x256xf32, #tpu.memory_space<vmem>>, vector<1x8x256xf32>,
    return
  }
  func.func @transform_0(%arg0: i32) -> (i32, i32, i32) {
    %c0_i32 = arith.constant 0 : i32
    %c0_i32_0 = arith.constant 0 : i32
    %c0_i32_1 = arith.constant 0 : i32
    return %arg0, %c0_i32, %c0_i32_0 : i32, i32, i32
  }
  func.func @transform_1(%arg0: i32) -> (i32, i32) {
    %c0_i32 = arith.constant 0 : i32
    %c0_i32_0 = arith.constant 0 : i32
    %c0_i32_1 = arith.constant 0 : i32
    return %c0_i32, %c0_i32_0 : i32, i32
  }
  func.func @transform_2(%arg0: i32) -> (i32, i32) {
    %c0_i32 = arith.constant 0 : i32
    %c0_i32_0 = arith.constant 0 : i32
    %c0_i32_1 = arith.constant 0 : i32
    return %c0_i32, %c0_i32_0 : i32, i32
  }
  func.func @transform_3(%arg0: i32) -> (i32, i32) {
    %c0_i32 = arith.constant 0 : i32
    %c0_i32_0 = arith.constant 0 : i32
    %c0_i32_1 = arith.constant 0 : i32
    return %c0_i32, %c0_i32_0 : i32, i32
  }
  func.func @transform_4(%arg0: i32) -> (i32, i32) {
    %c0_i32 = arith.constant 0 : i32
    %c0_i32_0 = arith.constant 0 : i32
    %c0_i32_1 = arith.constant 0 : i32
    return %c0_i32, %c0_i32_0 : i32, i32
  }
  func.func @transform_5(%arg0: i32) -> (i32, i32) {
    %c0_i32 = arith.constant 0 : i32
    %c0_i32_0 = arith.constant 0 : i32
    %c0_i32_1 = arith.constant 0 : i32
    return %c0_i32, %c0_i32_0 : i32, i32
  }
  func.func @transform_6(%arg0: i32) -> (i32, i32) {
    %c0_i32 = arith.constant 0 : i32
    %c0_i32_0 = arith.constant 0 : i32
    %c0_i32_1 = arith.constant 0 : i32
    return %c0_i32, %c0_i32_0 : i32, i32
  }
  func.func @transform_7(%arg0: i32) -> (i32, i32) {
    %c0_i32 = arith.constant 0 : i32
    %c0_i32_0 = arith.constant 0 : i32
    %c0_i32_1 = arith.constant 0 : i32
    return %c0_i32, %c0_i32_0 : i32, i32
  }
  func.func @transform_8(%arg0: i32) -> (i32, i32) {
    %c0_i32 = arith.constant 0 : i32
    %c0_i32_0 = arith.constant 0 : i32
    %c0_i32_1 = arith.constant 0 : i32
    return %c0_i32, %c0_i32_0 : i32, i32
  }
  func.func @transform_9(%arg0: i32) -> (i32, i32) {
    %c0_i32 = arith.constant 0 : i32
    %c0_i32_0 = arith.constant 0 : i32
    %c0_i32_1 = arith.constant 0 : i32
    return %c0_i32, %c0_i32_0 : i32, i32
  }
  func.func @transform_10(%arg0: i32) -> (i32, i32) {
    %c0_i32 = arith.constant 0 : i32
    %c0_i32_0 = arith.constant 0 : i32
    %c0_i32_1 = arith.constant 0 : i32
    return %c0_i32, %c0_i32_0 : i32, i32
  }
  func.func @transform_11(%arg0: i32) -> (i32, i32, i32) {
    %c0_i32 = arith.constant 0 : i32
    %c0_i32_0 = arith.constant 0 : i32
    %c0_i32_1 = arith.constant 0 : i32
    return %arg0, %c0_i32, %c0_i32_0 : i32, i32, i32
  }
}

</mosaic_0001>

<llo_original>
// kernel: inverted_residual_forward.1
$region0: #{inverted_residual_forward.1}
  #allocation0 [shape = 'u32[]', space=smem, size = 0x4, offset = 0x4, fixed_abs, tag = 'smem constant byte address 0x4 - core index']
  #allocation1 [shape = 'u32[144,128]{1,0:T(1,128)}', space=vmem, size = 0x12000, scoped, tag = 'internal scratch']
  #allocation2 [shape = 'f32[16,290]{1,0:T(8,128)}', space=vmem, size = 0x6000, scoped, tag = 'scratch operand']
  %s0 = inlined_call_operand.vmem [shape: f32[2,8,256], index: 0, kind: input, shape index: {}]
  %s1 = inlined_call_operand.vmem [shape: bf16[16,8], index: 1, kind: input, shape index: {}]
  %s2 = inlined_call_operand.vmem [shape: f32[16,1], index: 2, kind: input, shape index: {}]
  %s3 = inlined_call_operand.vmem [shape: f32[16,9], index: 3, kind: input, shape index: {}]
  %s4 = inlined_call_operand.vmem [shape: f32[16,1], index: 4, kind: input, shape index: {}]
  %s5 = inlined_call_operand.vmem [shape: f32[16,8], index: 5, kind: input, shape index: {}]
  %s6 = inlined_call_operand.vmem [shape: f32[1,8], index: 6, kind: input, shape index: {}]
  %s7 = inlined_call_operand.vmem [shape: f32[16,8], index: 7, kind: input, shape index: {}]
  %s8 = inlined_call_operand.vmem [shape: f32[16,1], index: 8, kind: input, shape index: {}]
  %s9 = inlined_call_operand.vmem [shape: bf16[8,16], index: 9, kind: input, shape index: {}]
  %s10 = inlined_call_operand.vmem [shape: f32[8,1], index: 10, kind: input, shape index: {}]
  %s11 = inlined_call_operand.vmem [shape: f32[2,8,256], index: 11, kind: output, shape index: {}]
  %s12 = sld [smem:[#allocation0]]
  $region77: #{inverted_residual_forward.1} parent=0
    _
  %s14 = ssub.s32 1, %s12
  %s15 = scalar_select 0, %s14, %s12
  loop: start=0, step=1, limit=4
  $region2: #{inverted_residual_forward.1} parent=0 // loop_pre_header
    _
  $region3: #{inverted_residual_forward.1} parent=0 // loop_header
    %s17 = sphi 0, %s21
    %p18 = scmp.ge.s32.totalorder %s17, 4
    %s27 = sphi 0, %s29
    %s30 = sphi 0, %s27
    %s31 = sphi 0, %s30
    %s47 = sphi 0, %s31
    %s51 = sphi 0, %s51
    %s53 = sphi 0, %s51
    %s54 = sphi 0, %s53
    %s68 = sphi 0, %s54
    %s72 = sphi 0, %s72
    %s74 = sphi 0, %s72
    %s75 = sphi 0, %s74
    %s89 = sphi 0, %s75
    %s93 = sphi 0, %s93
    %s95 = sphi 0, %s93
    %s96 = sphi 0, %s95
    %s110 = sphi 0, %s96
    %s114 = sphi 0, %s114
    %s116 = sphi 0, %s114
    %s117 = sphi 0, %s116
    %s131 = sphi 0, %s117
    %s135 = sphi 0, %s135
    %s137 = sphi 0, %s135
    %s138 = sphi 0, %s137
    %s152 = sphi 0, %s138
    %s156 = sphi 0, %s156
    %s158 = sphi 0, %s156
    %s159 = sphi 0, %s158
    %s173 = sphi 0, %s159
    %s177 = sphi 0, %s177
    %s179 = sphi 0, %s177
    %s180 = sphi 0, %s179
    %s194 = sphi 0, %s180
    %s198 = sphi 0, %s198
    %s200 = sphi 0, %s198
    %s201 = sphi 0, %s200
    %s215 = sphi 0, %s201
    %s219 = sphi 0, %s219
    %s221 = sphi 0, %s219
    %s222 = sphi 0, %s221
    %s236 = sphi 0, %s222
    %s240 = sphi 0, %s240
    %s242 = sphi 0, %s240
    %s243 = sphi 0, %s242
    %s257 = sphi 0, %s243
    %s263 = sphi 0, %s265
    %s266 = sphi 0, %s263
    %s267 = sphi 0, %s266
    %s283 = sphi 0, %s267
  $region4: #{inverted_residual_forward.1} parent=0 // loop_header_branch
    %20 = sbr.rel (%p18) target = $region8
  $region5: #{inverted_residual_forward.1} parent=0 // loop_body
    %s22 = ssub.s32 %s17, 1
    %s23 = ssub.s32 %s17, 2
    %s24 = sadd.s32 %s17, 1
    %s25 = ssub.s32 %s17, %s24
    %p26 = scmp.eq.s32.totalorder %s25, 0
    %s28 = sadd.s32 %s27, 1
    %s29 = scalar_select %p26, %s27, %s28
    %p32 = pneg %p26
    %p33 = scmp.eq.s32.totalorder %s17, 1
    %p34 = por %p32, %p33
    %p35 = scmp.ne.s32.totalorder %s27, %s30
    %p36 = scmp.eq.s32.totalorder %s17, 0
    %p37 = por %p35, %p36
    %p38 = scmp.ne.s32.totalorder %s27, %s30
    %p39 = scmp.eq.s32.totalorder %s22, 1
    %p40 = por %p38, %p39
    %p41 = scmp.ne.s32.totalorder %s30, %s31
    %p42 = scmp.eq.s32.totalorder %s22, 0
    %p43 = por %p41, %p42
    %p44 = scmp.ne.s32.totalorder %s30, %s31
    %p45 = scmp.eq.s32.totalorder %s23, 1
    %p46 = por %p44, %p45
    %p48 = scmp.ne.s32.totalorder %s31, %s47
    %p49 = scmp.eq.s32.totalorder %s23, 0
    %p50 = por %p48, %p49
    %s52 = sadd.s32 %s51, 1
    %p55 = scmp.eq.s32.totalorder %s17, 1
    %p56 = scmp.ne.s32.totalorder %s51, %s53
    %p57 = scmp.eq.s32.totalorder %s17, 0
    %p58 = por %p56, %p57
    %p59 = scmp.ne.s32.totalorder %s51, %s53
    %p60 = scmp.eq.s32.totalorder %s22, 1
    %p61 = por %p59, %p60
    %p62 = scmp.ne.s32.totalorder %s53, %s54
    %p63 = scmp.eq.s32.totalorder %s22, 0
    %p64 = por %p62, %p63
    %p65 = scmp.ne.s32.totalorder %s53, %s54
    %p66 = scmp.eq.s32.totalorder %s23, 1
    %p67 = por %p65, %p66
    %p69 = scmp.ne.s32.totalorder %s54, %s68
    %p70 = scmp.eq.s32.totalorder %s23, 0
    %p71 = por %p69, %p70
    %s73 = sadd.s32 %s72, 1
    %p76 = scmp.eq.s32.totalorder %s17, 1
    %p77 = scmp.ne.s32.totalorder %s72, %s74
    %p78 = scmp.eq.s32.totalorder %s17, 0
    %p79 = por %p77, %p78
    %p80 = scmp.ne.s32.totalorder %s72, %s74
    %p81 = scmp.eq.s32.totalorder %s22, 1
    %p82 = por %p80, %p81
    %p83 = scmp.ne.s32.totalorder %s74, %s75
    %p84 = scmp.eq.s32.totalorder %s22, 0
    %p85 = por %p83, %p84
    %p86 = scmp.ne.s32.totalorder %s74, %s75
    %p87 = scmp.eq.s32.totalorder %s23, 1
    %p88 = por %p86, %p87
    %p90 = scmp.ne.s32.totalorder %s75, %s89
    %p91 = scmp.eq.s32.totalorder %s23, 0
    %p92 = por %p90, %p91
    %s94 = sadd.s32 %s93, 1
    %p97 = scmp.eq.s32.totalorder %s17, 1
    %p98 = scmp.ne.s32.totalorder %s93, %s95
    %p99 = scmp.eq.s32.totalorder %s17, 0
    %p100 = por %p98, %p99
    %p101 = scmp.ne.s32.totalorder %s93, %s95
    %p102 = scmp.eq.s32.totalorder %s22, 1
    %p103 = por %p101, %p102
    %p104 = scmp.ne.s32.totalorder %s95, %s96
    %p105 = scmp.eq.s32.totalorder %s22, 0
    %p106 = por %p104, %p105
    %p107 = scmp.ne.s32.totalorder %s95, %s96
    %p108 = scmp.eq.s32.totalorder %s23, 1
    %p109 = por %p107, %p108
    %p111 = scmp.ne.s32.totalorder %s96, %s110
    %p112 = scmp.eq.s32.totalorder %s23, 0
    %p113 = por %p111, %p112
    %s115 = sadd.s32 %s114, 1
    %p118 = scmp.eq.s32.totalorder %s17, 1
    %p119 = scmp.ne.s32.totalorder %s114, %s116
    %p120 = scmp.eq.s32.totalorder %s17, 0
    %p121 = por %p119, %p120
    %p122 = scmp.ne.s32.totalorder %s114, %s116
    %p123 = scmp.eq.s32.totalorder %s22, 1
    %p124 = por %p122, %p123
    %p125 = scmp.ne.s32.totalorder %s116, %s117
    %p126 = scmp.eq.s32.totalorder %s22, 0
    %p127 = por %p125, %p126
    %p128 = scmp.ne.s32.totalorder %s116, %s117
    %p129 = scmp.eq.s32.totalorder %s23, 1
    %p130 = por %p128, %p129
    %p132 = scmp.ne.s32.totalorder %s117, %s131
    %p133 = scmp.eq.s32.totalorder %s23, 0
    %p134 = por %p132, %p133
    %s136 = sadd.s32 %s135, 1
    %p139 = scmp.eq.s32.totalorder %s17, 1
    %p140 = scmp.ne.s32.totalorder %s135, %s137
    %p141 = scmp.eq.s32.totalorder %s17, 0
    %p142 = por %p140, %p141
    %p143 = scmp.ne.s32.totalorder %s135, %s137
    %p144 = scmp.eq.s32.totalorder %s22, 1
    %p145 = por %p143, %p144
    %p146 = scmp.ne.s32.totalorder %s137, %s138
    %p147 = scmp.eq.s32.totalorder %s22, 0
    %p148 = por %p146, %p147
    %p149 = scmp.ne.s32.totalorder %s137, %s138
    %p150 = scmp.eq.s32.totalorder %s23, 1
    %p151 = por %p149, %p150
    %p153 = scmp.ne.s32.totalorder %s138, %s152
    %p154 = scmp.eq.s32.totalorder %s23, 0
    %p155 = por %p153, %p154
    %s157 = sadd.s32 %s156, 1
    %p160 = scmp.eq.s32.totalorder %s17, 1
    %p161 = scmp.ne.s32.totalorder %s156, %s158
    %p162 = scmp.eq.s32.totalorder %s17, 0
    %p163 = por %p161, %p162
    %p164 = scmp.ne.s32.totalorder %s156, %s158
    %p165 = scmp.eq.s32.totalorder %s22, 1
    %p166 = por %p164, %p165
    %p167 = scmp.ne.s32.totalorder %s158, %s159
    %p168 = scmp.eq.s32.totalorder %s22, 0
    %p169 = por %p167, %p168
    %p170 = scmp.ne.s32.totalorder %s158, %s159
    %p171 = scmp.eq.s32.totalorder %s23, 1
    %p172 = por %p170, %p171
    %p174 = scmp.ne.s32.totalorder %s159, %s173
    %p175 = scmp.eq.s32.totalorder %s23, 0
    %p176 = por %p174, %p175
    %s178 = sadd.s32 %s177, 1
    %p181 = scmp.eq.s32.totalorder %s17, 1
    %p182 = scmp.ne.s32.totalorder %s177, %s179
    %p183 = scmp.eq.s32.totalorder %s17, 0
    %p184 = por %p182, %p183
    %p185 = scmp.ne.s32.totalorder %s177, %s179
    %p186 = scmp.eq.s32.totalorder %s22, 1
    %p187 = por %p185, %p186
    %p188 = scmp.ne.s32.totalorder %s179, %s180
    %p189 = scmp.eq.s32.totalorder %s22, 0
    %p190 = por %p188, %p189
    %p191 = scmp.ne.s32.totalorder %s179, %s180
    %p192 = scmp.eq.s32.totalorder %s23, 1
    %p193 = por %p191, %p192
    %p195 = scmp.ne.s32.totalorder %s180, %s194
    %p196 = scmp.eq.s32.totalorder %s23, 0
    %p197 = por %p195, %p196
    %s199 = sadd.s32 %s198, 1
    %p202 = scmp.eq.s32.totalorder %s17, 1
    %p203 = scmp.ne.s32.totalorder %s198, %s200
    %p204 = scmp.eq.s32.totalorder %s17, 0
    %p205 = por %p203, %p204
    %p206 = scmp.ne.s32.totalorder %s198, %s200
    %p207 = scmp.eq.s32.totalorder %s22, 1
    %p208 = por %p206, %p207
    %p209 = scmp.ne.s32.totalorder %s200, %s201
    %p210 = scmp.eq.s32.totalorder %s22, 0
    %p211 = por %p209, %p210
    %p212 = scmp.ne.s32.totalorder %s200, %s201
    %p213 = scmp.eq.s32.totalorder %s23, 1
    %p214 = por %p212, %p213
    %p216 = scmp.ne.s32.totalorder %s201, %s215
    %p217 = scmp.eq.s32.totalorder %s23, 0
    %p218 = por %p216, %p217
    %s220 = sadd.s32 %s219, 1
    %p223 = scmp.eq.s32.totalorder %s17, 1
    %p224 = scmp.ne.s32.totalorder %s219, %s221
    %p225 = scmp.eq.s32.totalorder %s17, 0
    %p226 = por %p224, %p225
    %p227 = scmp.ne.s32.totalorder %s219, %s221
    %p228 = scmp.eq.s32.totalorder %s22, 1
    %p229 = por %p227, %p228
    %p230 = scmp.ne.s32.totalorder %s221, %s222
    %p231 = scmp.eq.s32.totalorder %s22, 0
    %p232 = por %p230, %p231
    %p233 = scmp.ne.s32.totalorder %s221, %s222
    %p234 = scmp.eq.s32.totalorder %s23, 1
    %p235 = por %p233, %p234
    %p237 = scmp.ne.s32.totalorder %s222, %s236
    %p238 = scmp.eq.s32.totalorder %s23, 0
    %p239 = por %p237, %p238
    %s241 = sadd.s32 %s240, 1
    %p244 = scmp.eq.s32.totalorder %s17, 1
    %p245 = scmp.ne.s32.totalorder %s240, %s242
    %p246 = scmp.eq.s32.totalorder %s17, 0
    %p247 = por %p245, %p246
    %p248 = scmp.ne.s32.totalorder %s240, %s242
    %p249 = scmp.eq.s32.totalorder %s22, 1
    %p250 = por %p248, %p249
    %p251 = scmp.ne.s32.totalorder %s242, %s243
    %p252 = scmp.eq.s32.totalorder %s22, 0
    %p253 = por %p251, %p252
    %p254 = scmp.ne.s32.totalorder %s242, %s243
    %p255 = scmp.eq.s32.totalorder %s23, 1
    %p256 = por %p254, %p255
    %p258 = scmp.ne.s32.totalorder %s243, %s257
    %p259 = scmp.eq.s32.totalorder %s23, 0
    %p260 = por %p258, %p259
    %s261 = ssub.s32 %s17, %s24
    %p262 = scmp.eq.s32.totalorder %s261, 0
    %s264 = sadd.s32 %s263, 1
    %s265 = scalar_select %p262, %s263, %s264
    %p268 = pneg %p262
    %p269 = scmp.eq.s32.totalorder %s17, 1
    %p270 = por %p268, %p269
    %p271 = scmp.ne.s32.totalorder %s263, %s266
    %p272 = scmp.eq.s32.totalorder %s17, 0
    %p273 = por %p271, %p272
    %p274 = scmp.ne.s32.totalorder %s263, %s266
    %p275 = scmp.eq.s32.totalorder %s22, 1
    %p276 = por %p274, %p275
    %p277 = scmp.ne.s32.totalorder %s266, %s267
    %p278 = scmp.eq.s32.totalorder %s22, 0
    %p279 = por %p277, %p278
    %p280 = scmp.ne.s32.totalorder %s266, %s267
    %p281 = scmp.eq.s32.totalorder %s23, 1
    %p282 = por %p280, %p281
    %p284 = scmp.ne.s32.totalorder %s267, %s283
    %p285 = scmp.eq.s32.totalorder %s23, 0
    %p286 = por %p284, %p285
    %p287 = scmp.le.s32.totalorder 1, %s17
    %p288 = scmp.lt.s32.totalorder %s17, 3
    %p289 = pnand %p287, %p288
    %p290 = pneg %p289
    // Predicated region
    $region9: #{inverted_residual_forward.1} parent=5 // pred_check
      _
    $region10: #{inverted_residual_forward.1} parent=5 // pred_check_branch
      %292 = sbr.rel (%p289) target = $region12
    $region11: #{inverted_residual_forward.1} parent=5 // pred_region
      %s293 = ssub.s32 %s17, 1
      // Predicated region
      $region13: #{inverted_residual_forward.1} parent=11 // pred_check
        %p294 = pneg %p64
      $region14: #{inverted_residual_forward.1} parent=11 // pred_check_branch
        %296 = sbr.rel (%p294) target = $region16
      $region15: #{inverted_residual_forward.1} parent=11 // pred_region
        _
      $region16: #{inverted_residual_forward.1} parent=11 // pred_fallthru
        _
      // Predicated region
      $region17: #{inverted_residual_forward.1} parent=11 // pred_check
        %p297 = pneg %p85
      $region18: #{inverted_residual_forward.1} parent=11 // pred_check_branch
        %299 = sbr.rel (%p297) target = $region20
      $region19: #{inverted_residual_forward.1} parent=11 // pred_region
        _
      $region20: #{inverted_residual_forward.1} parent=11 // pred_fallthru
        _
      // Predicated region
      $region21: #{inverted_residual_forward.1} parent=11 // pred_check
        %p300 = pneg %p106
      $region22: #{inverted_residual_forward.1} parent=11 // pred_check_branch
        %302 = sbr.rel (%p300) target = $region24
      $region23: #{inverted_residual_forward.1} parent=11 // pred_region
        _
      $region24: #{inverted_residual_forward.1} parent=11 // pred_fallthru
        _
      // Predicated region
      $region25: #{inverted_residual_forward.1} parent=11 // pred_check
        %p303 = pneg %p127
      $region26: #{inverted_residual_forward.1} parent=11 // pred_check_branch
        %305 = sbr.rel (%p303) target = $region28
      $region27: #{inverted_residual_forward.1} parent=11 // pred_region
        _
      $region28: #{inverted_residual_forward.1} parent=11 // pred_fallthru
        _
      // Predicated region
      $region29: #{inverted_residual_forward.1} parent=11 // pred_check
        %p306 = pneg %p148
      $region30: #{inverted_residual_forward.1} parent=11 // pred_check_branch
        %308 = sbr.rel (%p306) target = $region32
      $region31: #{inverted_residual_forward.1} parent=11 // pred_region
        _
      $region32: #{inverted_residual_forward.1} parent=11 // pred_fallthru
        _
      // Predicated region
      $region33: #{inverted_residual_forward.1} parent=11 // pred_check
        %p309 = pneg %p169
      $region34: #{inverted_residual_forward.1} parent=11 // pred_check_branch
        %311 = sbr.rel (%p309) target = $region36
      $region35: #{inverted_residual_forward.1} parent=11 // pred_region
        _
      $region36: #{inverted_residual_forward.1} parent=11 // pred_fallthru
        _
      // Predicated region
      $region37: #{inverted_residual_forward.1} parent=11 // pred_check
        %p312 = pneg %p190
      $region38: #{inverted_residual_forward.1} parent=11 // pred_check_branch
        %314 = sbr.rel (%p312) target = $region40
      $region39: #{inverted_residual_forward.1} parent=11 // pred_region
        _
      $region40: #{inverted_residual_forward.1} parent=11 // pred_fallthru
        _
      // Predicated region
      $region41: #{inverted_residual_forward.1} parent=11 // pred_check
        %p315 = pneg %p211
      $region42: #{inverted_residual_forward.1} parent=11 // pred_check_branch
        %317 = sbr.rel (%p315) target = $region44
      $region43: #{inverted_residual_forward.1} parent=11 // pred_region
        _
      $region44: #{inverted_residual_forward.1} parent=11 // pred_fallthru
        _
      // Predicated region
      $region45: #{inverted_residual_forward.1} parent=11 // pred_check
        %p318 = pneg %p232
      $region46: #{inverted_residual_forward.1} parent=11 // pred_check_branch
        %320 = sbr.rel (%p318) target = $region48
      $region47: #{inverted_residual_forward.1} parent=11 // pred_region
        _
      $region48: #{inverted_residual_forward.1} parent=11 // pred_fallthru
        _
      // Predicated region
      $region49: #{inverted_residual_forward.1} parent=11 // pred_check
        %p321 = pneg %p253
      $region50: #{inverted_residual_forward.1} parent=11 // pred_check_branch
        %323 = sbr.rel (%p321) target = $region52
      $region51: #{inverted_residual_forward.1} parent=11 // pred_region
        _
      $region52: #{inverted_residual_forward.1} parent=11 // pred_fallthru
        _
    $region12: #{inverted_residual_forward.1} parent=5 // pred_fallthru
      _
    %p324 = scmp.lt.s32.totalorder %s17, 2
    // Predicated region
    $region53: #{inverted_residual_forward.1} parent=5 // pred_check
      %p325 = pneg %p324
    $region54: #{inverted_residual_forward.1} parent=5 // pred_check_branch
      %327 = sbr.rel (%p325) target = $region56
    $region55: #{inverted_residual_forward.1} parent=5 // pred_region
      // Predicated region
      $region57: #{inverted_residual_forward.1} parent=55 // pred_check
        %p328 = pneg %p37
      $region58: #{inverted_residual_forward.1} parent=55 // pred_check_branch
        %330 = sbr.rel (%p328) target = $region60
      $region59: #{inverted_residual_forward.1} parent=55 // pred_region
        %p331 = scmp.lt.s32.totalorder %s17, 1
        %s332 = scalar_select %p331, %s17, 1
        %s333 = smul.addr %s332, 2
        %s334 = smul.addr %s333, 8
        %s335 = scalar_lea.vmem %s0, %s334
      $region60: #{inverted_residual_forward.1} parent=55 // pred_fallthru
        _
    $region56: #{inverted_residual_forward.1} parent=5 // pred_fallthru
      _
    %p336 = scmp.le.s32.totalorder 1, %s17
    %p337 = scmp.lt.s32.totalorder %s17, 3
    %p338 = pnand %p336, %p337
    %p339 = pneg %p338
    // Predicated region
    $region61: #{inverted_residual_forward.1} parent=5 // pred_check
      _
    $region62: #{inverted_residual_forward.1} parent=5 // pred_check_branch
      %341 = sbr.rel (%p338) target = $region64
    $region63: #{inverted_residual_forward.1} parent=5 // pred_region
      %s342 = ssub.s32 %s17, 1
      %p343 = scmp.lt.s32.totalorder %s22, 1
      %s344 = scalar_select %p343, %s22, 1
      %s345 = smul.addr %s344, 2
      %s346 = smul.addr %s345, 8
      %s347 = scalar_lea.vmem %s0, %s346
      %p348 = pneg %p43
      %p349 = pneg %p40
      %p350 = pneg %p64
      %p351 = pneg %p61
      %p352 = pneg %p85
      %p353 = pneg %p82
      %p354 = pneg %p106
      %p355 = pneg %p103
      %p356 = pneg %p127
      %p357 = pneg %p124
      %p358 = pneg %p148
      %p359 = pneg %p145
      %p360 = pneg %p169
      %p361 = pneg %p166
      %p362 = pneg %p190
      %p363 = pneg %p187
      %p364 = pneg %p211
      %p365 = pneg %p208
      %p366 = pneg %p232
      %p367 = pneg %p229
      %p368 = pneg %p253
      %p369 = pneg %p250
      %p370 = pneg %p279
      %p371 = pneg %p276
      %p372 = scmp.lt.s32.totalorder %s22, 1
      %s373 = scalar_select %p372, %s22, 1
      %s374 = smul.addr %s373, 2
      %s375 = smul.addr %s374, 8
      %s376 = scalar_lea.vmem %s11, %s375
      %p377 = scmp.lt.s32.totalorder %s22, 1
      %s378 = scalar_select %p377, %s22, 1
      %s379 = smul.addr %s378, 2
      %s380 = smul.addr %s379, 8
      %s381 = scalar_lea.vmem %s0, %s380
      %p382 = scmp.lt.s32.totalorder %s22, 1
      %s383 = scalar_select %p382, %s22, 1
      %s384 = smul.addr %s383, 2
      %s385 = smul.addr %s384, 8
      %s386 = scalar_lea.vmem %s11, %s385
      %v388 = vld [vmem:[%s381] sm:$0xff]
      %v389 = vld [vmem:[%s381 + $0x8] sm:$0xff]
      %v390 = vld [vmem:[%s1] sm:$0xf]
      %v391 = vld [vmem:[%s1 + $0x4] sm:$0xf]
      %v392 = vpack.c.bf16 %v388, %v388
      %v393 = vpack.c.bf16 %v389, %v389
      %v394 = vld [vmem:[%s2] sm:$0xff]
      %v395 = vld [vmem:[%s2 + $0x8] sm:$0xff]
      %397 = vset.pattern.permute.xlu0 0
      %398 = vperm.xlu0 %397, %v394
      %v399 = vpop.permute.xlu0 %398
      %402 = vset.pattern.permute.xlu0 0
      %403 = vperm.xlu0 %402, %v395
      %v404 = vpop.permute.xlu0 %403
      %v408 = vunpack.c.l.b16 %v390
      %v409 = vunpack.c.l.b16 %v391
      %v410 = vpack.c.b16 %v409, %v408
      %vm411 = vcmask 64512
      %v413 = vsel %vm411, %v410, 0
      %vm415 = vcmask 1043456
      %v417 = vsel %vm415, %v392, 0
      %v420 = vsel %vm415, %v393, 0
      %422 = vmatprep.subr.bf16.mxu0 %v420
      %423 = vmatpush1.bf16.msra.mxu0 %v417
      %424 = vmatprep.subr.bf16.mxu0 0
      %425 = vmatpush1.bf16.msra.mxu0 0
      %426 = vmatprep.subr.bf16.mxu0 0
      %427 = vmatpush1.bf16.msra.mxu0 0
      %428 = vmatprep.subr.bf16.mxu0 0
      %429 = vmatpush1.bf16.msra.mxu0 0
      %430 = vmatprep.subr.bf16.mxu0 0
      %431 = vmatpush1.bf16.msra.mxu0 0
      %432 = vmatprep.subr.bf16.mxu0 0
      %433 = vmatpush1.bf16.msra.mxu0 0
      %434 = vmatprep.subr.bf16.mxu0 0
      %435 = vmatpush1.bf16.msra.mxu0 0
      %436 = vmatprep.subr.bf16.mxu0 0
      %437 = vmatpush1.bf16.msra.mxu0 0
      %438 = vmatprep.subr.bf16.mxu0 0
      %439 = vmatpush1.bf16.msra.mxu0 0
      %440 = vmatprep.subr.bf16.mxu0 0
      %441 = vmatpush1.bf16.msra.mxu0 0
      %442 = vmatprep.subr.bf16.mxu0 0
      %443 = vmatpush1.bf16.msra.mxu0 0
      %444 = vmatprep.subr.bf16.mxu0 0
      %445 = vmatpush1.bf16.msra.mxu0 0
      %446 = vmatprep.subr.bf16.mxu0 0
      %447 = vmatpush1.bf16.msra.mxu0 0
      %448 = vmatprep.subr.bf16.mxu0 0
      %449 = vmatpush1.bf16.msra.mxu0 0
      %450 = vmatprep.subr.bf16.mxu0 0
      %451 = vmatpush1.bf16.msra.mxu0 0
      %452 = vmatprep.subr.bf16.mxu0 0
      %453 = vmatpush1.bf16.msra.mxu0 0
      %454 = vmatprep.mubr.bf16.mxu0 0
      %455 = vmatmul.mubr.bf16.gmra.mrb[0].mxu0 %v413
      %v456 = vpop.f32.mrb[0].mxu0
      %v457 = vadd.f32 %v399, %v456
      %v458 = vpop.f32.mrb[0].mxu0
      %v459 = vadd.f32 %v399, %v458
      %v460 = vpop.f32.mrb[0].mxu0
      %v461 = vadd.f32 %v404, %v460
      %v462 = vpop.f32.mrb[0].mxu0
      %v463 = vadd.f32 %v404, %v462
      %464 = vdwg.mxu0
      %v465 = vadd.f32 %v457, 3.0
      %v466 = vadd.f32 %v459, 3.0
      %v467 = vadd.f32 %v461, 3.0
      %v468 = vadd.f32 %v463, 3.0
      %v469 = vmax.f32 %v465, 0.0
      %v470 = vmax.f32 %v466, 0.0
      %v471 = vmax.f32 %v467, 0.0
      %v472 = vmax.f32 %v468, 0.0
      %v473 = vmin.f32 %v469, 6.0
      %v474 = vmin.f32 %v470, 6.0
      %v475 = vmin.f32 %v471, 6.0
      %v476 = vmin.f32 %v472, 6.0
      %v477 = vmul.f32 %v473, 0.16666667
      %v478 = vmul.f32 %v474, 0.16666667
      %v479 = vmul.f32 %v475, 0.16666667
      %v480 = vmul.f32 %v476, 0.16666667
      %v481 = vmul.f32 %v457, %v477
      %v482 = vmul.f32 %v459, %v478
      %v483 = vmul.f32 %v461, %v479
      %v484 = vmul.f32 %v463, %v480
      %vm485 = vcmask 138240
      %486 = vst.msk [vmem:[#allocation2] sm:$0xff] %vm485, 0.0
      %487 = vst.msk [vmem:[#allocation2 + $0x18] sm:$0xff] %vm485, 0.0
      %vm488 = vcmask 277640
      %489 = vst.msk [vmem:[#allocation2 + $0x10] sm:$0xff] %vm488, 0.0
      %490 = vst.msk [vmem:[#allocation2 + $0x28] sm:$0xff] %vm488, 0.0
      %495 = vrot.lane.b32.xlu0 %v481, 17
      %v496 = vpop.permute.xlu0 %495
      %497 = vrot.lane.b32.xlu0 %v482, 17
      %v498 = vpop.permute.xlu0 %497
      %499 = vrot.lane.b32.xlu0 %v483, 17
      %v500 = vpop.permute.xlu0 %499
      %501 = vrot.lane.b32.xlu0 %v484, 17
      %v502 = vpop.permute.xlu0 %501
      %v503 = vsel %vm485, %v496, %v498
      %v504 = vsel %vm485, %v500, %v502
      %vm511 = vcmask 1047688
      %512 = vst.msk [vmem:[#allocation2] sm:$0xff] %vm511, %v496
      %513 = vst [vmem:[#allocation2 + $0x8] sm:$0xff] %v503
      %514 = vst.msk [vmem:[#allocation2 + $0x10] sm:$0xff] %vm485, %v498
      %515 = vst.msk [vmem:[#allocation2 + $0x18] sm:$0xff] %vm511, %v500
      %516 = vst [vmem:[#allocation2 + $0x20] sm:$0xff] %v504
      %517 = vst.msk [vmem:[#allocation2 + $0x28] sm:$0xff] %vm485, %v502
      %v518 = vlaneseq
      %v519 = vand.u32 %v518, 127
      %v520 = vadd.s32 %v519, 128
      %vm521 = vcmp.lt.s32.totalorder %v519, 0
      %v522 = vsub.s32 0, %v519
      %v523 = vsel %vm521, %v522, %v519
      %v524 = vshrl.u32 %v523, 4
      %v525 = vand.u32 %v523, 15
      %v526 = vsub.s32 0, %v525
      %v527 = vsel %vm521, %v526, %v525
      %vm528 = vcmp.lt.s32.totalorder %v520, 0
      %v529 = vsub.s32 0, %v520
      %v530 = vsel %vm528, %v529, %v520
      %v531 = vshrl.u32 %v530, 4
      %v532 = vand.u32 %v530, 15
      %v533 = vsub.s32 0, %v532
      %v534 = vsel %vm528, %v533, %v532
      %vm535 = vcmp.ne.s32.totalorder %v527, 0
      %vm536 = vcmp.ne.s32.totalorder %v534, 0
      %vm537 = vcmp.lt.s32.totalorder %v527, 0
      %vm538 = vcmp.lt.s32.totalorder %v534, 0
      %vm539 = vmand %vm537, %vm535
      %vm540 = vmand %vm538, %vm536
      %v541 = vadd.s32 %v527, 16
      %v542 = vadd.s32 %v534, 16
      %v543 = vsel %vm539, %v541, %v527
      %v544 = vsel %vm540, %v542, %v534
      %v545 = vadd.s32 %v543, 4294967295
      %v546 = vadd.s32 %v544, 4294967295
      %vm547 = vcmp.ge.s32.totalorder %v545, 0
      %vm548 = vcmp.ge.s32.totalorder %v546, 0
      %vm549 = vcmp.lt.s32.totalorder %v545, 16
      %vm550 = vcmp.lt.s32.totalorder %v546, 16
      %vm551 = vmand %vm547, %vm549
      %vm552 = vmand %vm548, %vm550
      %v553 = vsel %vm551, 1, 0
      %v554 = vsel %vm552, 1, 0
      %v555 = vcvt.s32.f32 %v553
      %v556 = vcvt.s32.f32 %v554
      %v557 = vadd.s32 %v543, 1
      %v558 = vadd.s32 %v544, 1
      %vm559 = vcmp.ge.s32.totalorder %v557, 0
      %vm560 = vcmp.ge.s32.totalorder %v558, 0
      %vm561 = vcmp.lt.s32.totalorder %v557, 16
      %vm562 = vcmp.lt.s32.totalorder %v558, 16
      %vm563 = vmand %vm559, %vm561
      %vm564 = vmand %vm560, %vm562
      %v565 = vsel %vm563, 1, 0
      %v566 = vsel %vm564, 1, 0
      %v567 = vcvt.s32.f32 %v565
      %v568 = vcvt.s32.f32 %v566
      %v569 = vld [vmem:[%s3] sm:$0xff]
      %v570 = vld [vmem:[%s3 + $0x8] sm:$0xff]
      %v571 = vld [vmem:[#allocation2] sm:$0xff]
      %v572 = vld [vmem:[#allocation2 + $0x8] sm:$0xff]
      %v573 = vld [vmem:[#allocation2 + $0x18] sm:$0xff]
      %v574 = vld [vmem:[#allocation2 + $0x20] sm:$0xff]
      %576 = vset.pattern.permute.xlu0 0
      %577 = vperm.xlu0 %576, %v569
      %v578 = vpop.permute.xlu0 %577
      %581 = vset.pattern.permute.xlu0 0
      %582 = vperm.xlu0 %581, %v570
      %v583 = vpop.permute.xlu0 %582
      %v585 = vmul.f32 %v571, %v578
      %v586 = vmul.f32 %v572, %v578
      %v587 = vmul.f32 %v573, %v583
      %v588 = vmul.f32 %v574, %v583
      %v589 = vld [vmem:[#allocation2] sm:$0xff]
      %v590 = vld [vmem:[#allocation2 + $0x8] sm:$0xff]
      %v591 = vld [vmem:[#allocation2 + $0x10] sm:$0xff]
      %v592 = vld [vmem:[#allocation2 + $0x18] sm:$0xff]
      %v593 = vld [vmem:[#allocation2 + $0x20] sm:$0xff]
      %v594 = vld [vmem:[#allocation2 + $0x28] sm:$0xff]
      %595 = vset.pattern.permute.xlu0 3
      %596 = vperm.xlu0 %595, %v569
      %v597 = vpop.permute.xlu0 %596
      %599 = vset.pattern.permute.xlu0 3
      %600 = vperm.xlu0 %599, %v570
      %v601 = vpop.permute.xlu0 %600
      %v603 = vmul.f32 %v589, %v597
      %v604 = vmul.f32 %v590, %v597
      %v605 = vmul.f32 %v591, %v597
      %v606 = vmul.f32 %v592, %v601
      %v607 = vmul.f32 %v593, %v601
      %v608 = vmul.f32 %v594, %v601
      %615 = vrot.lane.b32.xlu0 %v603, 112
      %v616 = vpop.permute.xlu0 %615
      %617 = vrot.lane.b32.xlu0 %v604, 112
      %v618 = vpop.permute.xlu0 %617
      %619 = vrot.lane.b32.xlu0 %v605, 112
      %v620 = vpop.permute.xlu0 %619
      %621 = vrot.lane.b32.xlu0 %v606, 112
      %v622 = vpop.permute.xlu0 %621
      %623 = vrot.lane.b32.xlu0 %v607, 112
      %v624 = vpop.permute.xlu0 %623
      %625 = vrot.lane.b32.xlu0 %v608, 112
      %v626 = vpop.permute.xlu0 %625
      %vm627 = vcmask 916480
      %v628 = vsel %vm627, %v616, %v618
      %v629 = vsel %vm627, %v618, %v620
      %v630 = vsel %vm627, %v622, %v624
      %v631 = vsel %vm627, %v624, %v626
      %v636 = vadd.f32 %v585, %v628
      %v637 = vadd.f32 %v586, %v629
      %v638 = vadd.f32 %v587, %v630
      %v639 = vadd.f32 %v588, %v631
      %640 = vset.pattern.permute.xlu0 6
      %641 = vperm.xlu0 %640, %v569
      %v642 = vpop.permute.xlu0 %641
      %644 = vset.pattern.permute.xlu0 6
      %645 = vperm.xlu0 %644, %v570
      %v646 = vpop.permute.xlu0 %645
      %v648 = vmul.f32 %v589, %v642
      %v649 = vmul.f32 %v590, %v642
      %v650 = vmul.f32 %v591, %v642
      %v651 = vmul.f32 %v592, %v646
      %v652 = vmul.f32 %v593, %v646
      %v653 = vmul.f32 %v594, %v646
      %660 = vrot.lane.b32.xlu0 %v648, 96
      %v661 = vpop.permute.xlu0 %660
      %662 = vrot.lane.b32.xlu0 %v649, 96
      %v663 = vpop.permute.xlu0 %662
      %664 = vrot.lane.b32.xlu0 %v650, 96
      %v665 = vpop.permute.xlu0 %664
      %666 = vrot.lane.b32.xlu0 %v651, 96
      %v667 = vpop.permute.xlu0 %666
      %668 = vrot.lane.b32.xlu0 %v652, 96
      %v669 = vpop.permute.xlu0 %668
      %670 = vrot.lane.b32.xlu0 %v653, 96
      %v671 = vpop.permute.xlu0 %670
      %vm672 = vcmask 785408
      %v673 = vsel %vm672, %v661, %v663
      %v674 = vsel %vm672, %v663, %v665
      %v675 = vsel %vm672, %v667, %v669
      %v676 = vsel %vm672, %v669, %v671
      %v681 = vadd.f32 %v636, %v673
      %v682 = vadd.f32 %v637, %v674
      %v683 = vadd.f32 %v638, %v675
      %v684 = vadd.f32 %v639, %v676
      %v685 = vmul.f32 %v681, %v555
      %v686 = vmul.f32 %v682, %v556
      %v687 = vmul.f32 %v683, %v555
      %v688 = vmul.f32 %v684, %v556
      %689 = vset.pattern.permute.xlu0 1
      %690 = vperm.xlu0 %689, %v569
      %v691 = vpop.permute.xlu0 %690
      %693 = vset.pattern.permute.xlu0 1
      %694 = vperm.xlu0 %693, %v570
      %v695 = vpop.permute.xlu0 %694
      %v697 = vmul.f32 %v589, %v691
      %v698 = vmul.f32 %v590, %v691
      %v699 = vmul.f32 %v591, %v691
      %v700 = vmul.f32 %v592, %v695
      %v701 = vmul.f32 %v593, %v695
      %v702 = vmul.f32 %v594, %v695
      %703 = vset.pattern.permute.xlu0 4
      %704 = vperm.xlu0 %703, %v569
      %v705 = vpop.permute.xlu0 %704
      %707 = vset.pattern.permute.xlu0 4
      %708 = vperm.xlu0 %707, %v570
      %v709 = vpop.permute.xlu0 %708
      %v711 = vmul.f32 %v589, %v705
      %v712 = vmul.f32 %v590, %v705
      %v713 = vmul.f32 %v591, %v705
      %v714 = vmul.f32 %v592, %v709
      %v715 = vmul.f32 %v593, %v709
      %v716 = vmul.f32 %v594, %v709
      %723 = vrot.lane.b32.xlu0 %v711, 112
      %v724 = vpop.permute.xlu0 %723
      %725 = vrot.lane.b32.xlu0 %v712, 112
      %v726 = vpop.permute.xlu0 %725
      %727 = vrot.lane.b32.xlu0 %v713, 112
      %v728 = vpop.permute.xlu0 %727
      %729 = vrot.lane.b32.xlu0 %v714, 112
      %v730 = vpop.permute.xlu0 %729
      %731 = vrot.lane.b32.xlu0 %v715, 112
      %v732 = vpop.permute.xlu0 %731
      %733 = vrot.lane.b32.xlu0 %v716, 112
      %v734 = vpop.permute.xlu0 %733
      %v735 = vsel %vm627, %v724, %v726
      %v736 = vsel %vm627, %v726, %v728
      %v737 = vsel %vm627, %v730, %v732
      %v738 = vsel %vm627, %v732, %v734
      %v745 = vadd.f32 %v697, %v735
      %v746 = vadd.f32 %v698, %v736
      %v747 = vadd.f32 %v699, %v728
      %v748 = vadd.f32 %v700, %v737
      %v749 = vadd.f32 %v701, %v738
      %v750 = vadd.f32 %v702, %v734
      %751 = vset.pattern.permute.xlu0 7
      %752 = vperm.xlu0 %751, %v569
      %v753 = vpop.permute.xlu0 %752
      %755 = vset.pattern.permute.xlu0 7
      %756 = vperm.xlu0 %755, %v570
      %v757 = vpop.permute.xlu0 %756
      %v759 = vmul.f32 %v589, %v753
      %v760 = vmul.f32 %v590, %v753
      %v761 = vmul.f32 %v591, %v753
      %v762 = vmul.f32 %v592, %v757
      %v763 = vmul.f32 %v593, %v757
      %v764 = vmul.f32 %v594, %v757
      %771 = vrot.lane.b32.xlu0 %v759, 96
      %v772 = vpop.permute.xlu0 %771
      %773 = vrot.lane.b32.xlu0 %v760, 96
      %v774 = vpop.permute.xlu0 %773
      %775 = vrot.lane.b32.xlu0 %v761, 96
      %v776 = vpop.permute.xlu0 %775
      %777 = vrot.lane.b32.xlu0 %v762, 96
      %v778 = vpop.permute.xlu0 %777
      %779 = vrot.lane.b32.xlu0 %v763, 96
      %v780 = vpop.permute.xlu0 %779
      %781 = vrot.lane.b32.xlu0 %v764, 96
      %v782 = vpop.permute.xlu0 %781
      %v783 = vsel %vm672, %v772, %v774
      %v784 = vsel %vm672, %v774, %v776
      %v785 = vsel %vm672, %v778, %v780
      %v786 = vsel %vm672, %v780, %v782
      %v793 = vadd.f32 %v745, %v783
      %v794 = vadd.f32 %v746, %v784
      %v795 = vadd.f32 %v747, %v776
      %v796 = vadd.f32 %v748, %v785
      %v797 = vadd.f32 %v749, %v786
      %v798 = vadd.f32 %v750, %v782
      %805 = vrot.lane.b32.xlu0 %v793, 127
      %v806 = vpop.permute.xlu0 %805
      %807 = vrot.lane.b32.xlu0 %v794, 127
      %v808 = vpop.permute.xlu0 %807
      %809 = vrot.lane.b32.xlu0 %v795, 127
      %v810 = vpop.permute.xlu0 %809
      %811 = vrot.lane.b32.xlu0 %v796, 127
      %v812 = vpop.permute.xlu0 %811
      %813 = vrot.lane.b32.xlu0 %v797, 127
      %v814 = vpop.permute.xlu0 %813
      %815 = vrot.lane.b32.xlu0 %v798, 127
      %v816 = vpop.permute.xlu0 %815
      %vm817 = vcmask 1039360
      %v818 = vsel %vm817, %v806, %v808
      %v819 = vsel %vm817, %v808, %v810
      %v820 = vsel %vm817, %v812, %v814
      %v821 = vsel %vm817, %v814, %v816
      %v826 = vadd.f32 %v685, %v818
      %v827 = vadd.f32 %v686, %v819
      %v828 = vadd.f32 %v687, %v820
      %v829 = vadd.f32 %v688, %v821
      %830 = vset.pattern.permute.xlu0 2
      %831 = vperm.xlu0 %830, %v569
      %v832 = vpop.permute.xlu0 %831
      %834 = vset.pattern.permute.xlu0 2
      %835 = vperm.xlu0 %834, %v570
      %v836 = vpop.permute.xlu0 %835
      %v838 = vmul.f32 %v589, %v832
      %v839 = vmul.f32 %v590, %v832
      %v840 = vmul.f32 %v591, %v832
      %v841 = vmul.f32 %v592, %v836
      %v842 = vmul.f32 %v593, %v836
      %v843 = vmul.f32 %v594, %v836
      %844 = vset.pattern.permute.xlu0 5
      %845 = vperm.xlu0 %844, %v569
      %v846 = vpop.permute.xlu0 %845
      %848 = vset.pattern.permute.xlu0 5
      %849 = vperm.xlu0 %848, %v570
      %v850 = vpop.permute.xlu0 %849
      %v852 = vmul.f32 %v589, %v846
      %v853 = vmul.f32 %v590, %v846
      %v854 = vmul.f32 %v591, %v846
      %v855 = vmul.f32 %v592, %v850
      %v856 = vmul.f32 %v593, %v850
      %v857 = vmul.f32 %v594, %v850
      %864 = vrot.lane.b32.xlu0 %v852, 112
      %v865 = vpop.permute.xlu0 %864
      %866 = vrot.lane.b32.xlu0 %v853, 112
      %v867 = vpop.permute.xlu0 %866
      %868 = vrot.lane.b32.xlu0 %v854, 112
      %v869 = vpop.permute.xlu0 %868
      %870 = vrot.lane.b32.xlu0 %v855, 112
      %v871 = vpop.permute.xlu0 %870
      %872 = vrot.lane.b32.xlu0 %v856, 112
      %v873 = vpop.permute.xlu0 %872
      %874 = vrot.lane.b32.xlu0 %v857, 112
      %v875 = vpop.permute.xlu0 %874
      %v876 = vsel %vm627, %v865, %v867
      %v877 = vsel %vm627, %v867, %v869
      %v878 = vsel %vm627, %v871, %v873
      %v879 = vsel %vm627, %v873, %v875
      %v886 = vadd.f32 %v838, %v876
      %v887 = vadd.f32 %v839, %v877
      %v888 = vadd.f32 %v840, %v869
      %v889 = vadd.f32 %v841, %v878
      %v890 = vadd.f32 %v842, %v879
      %v891 = vadd.f32 %v843, %v875
      %892 = vset.pattern.permute.xlu0 8
      %893 = vperm.xlu0 %892, %v569
      %v894 = vpop.permute.xlu0 %893
      %896 = vset.pattern.permute.xlu0 8
      %897 = vperm.xlu0 %896, %v570
      %v898 = vpop.permute.xlu0 %897
      %v900 = vmul.f32 %v589, %v894
      %v901 = vmul.f32 %v590, %v894
      %v902 = vmul.f32 %v591, %v894
      %v903 = vmul.f32 %v592, %v898
      %v904 = vmul.f32 %v593, %v898
      %v905 = vmul.f32 %v594, %v898
      %912 = vrot.lane.b32.xlu0 %v900, 96
      %v913 = vpop.permute.xlu0 %912
      %914 = vrot.lane.b32.xlu0 %v901, 96
      %v915 = vpop.permute.xlu0 %914
      %916 = vrot.lane.b32.xlu0 %v902, 96
      %v917 = vpop.permute.xlu0 %916
      %918 = vrot.lane.b32.xlu0 %v903, 96
      %v919 = vpop.permute.xlu0 %918
      %920 = vrot.lane.b32.xlu0 %v904, 96
      %v921 = vpop.permute.xlu0 %920
      %922 = vrot.lane.b32.xlu0 %v905, 96
      %v923 = vpop.permute.xlu0 %922
      %v924 = vsel %vm672, %v913, %v915
      %v925 = vsel %vm672, %v915, %v917
      %v926 = vsel %vm672, %v919, %v921
      %v927 = vsel %vm672, %v921, %v923
      %v934 = vadd.f32 %v886, %v924
      %v935 = vadd.f32 %v887, %v925
      %v936 = vadd.f32 %v888, %v917
      %v937 = vadd.f32 %v889, %v926
      %v938 = vadd.f32 %v890, %v927
      %v939 = vadd.f32 %v891, %v923
      %942 = vrot.lane.b32.xlu0 %v567, 2
      %v943 = vpop.permute.xlu0 %942
      %944 = vrot.lane.b32.xlu0 %v568, 2
      %v945 = vpop.permute.xlu0 %944
      %vm946 = vcmask 15360
      %v947 = vsel %vm946, %v943, %v945
      %v951 = vmul.f32 %v934, %v943
      %v952 = vmul.f32 %v935, %v947
      %v953 = vmul.f32 %v936, %v945
      %v954 = vmul.f32 %v937, %v943
      %v955 = vmul.f32 %v938, %v947
      %v956 = vmul.f32 %v939, %v945
      %963 = vrot.lane.b32.xlu0 %v951, 126
      %v964 = vpop.permute.xlu0 %963
      %965 = vrot.lane.b32.xlu0 %v952, 126
      %v966 = vpop.permute.xlu0 %965
      %967 = vrot.lane.b32.xlu0 %v953, 126
      %v968 = vpop.permute.xlu0 %967
      %969 = vrot.lane.b32.xlu0 %v954, 126
      %v970 = vpop.permute.xlu0 %969
      %971 = vrot.lane.b32.xlu0 %v955, 126
      %v972 = vpop.permute.xlu0 %971
      %973 = vrot.lane.b32.xlu0 %v956, 126
      %v974 = vpop.permute.xlu0 %973
      %vm975 = vcmask 1031168
      %v976 = vsel %vm975, %v964, %v966
      %v977 = vsel %vm975, %v966, %v968
      %v978 = vsel %vm975, %v970, %v972
      %v979 = vsel %vm975, %v972, %v974
      %v984 = vadd.f32 %v826, %v976
      %v985 = vadd.f32 %v827, %v977
      %v986 = vadd.f32 %v828, %v978
      %v987 = vadd.f32 %v829, %v979
      %v988 = vld [vmem:[%s4] sm:$0xff]
      %v989 = vld [vmem:[%s4 + $0x8] sm:$0xff]
      %991 = vset.pattern.permute.xlu0 0
      %992 = vperm.xlu0 %991, %v988
      %v993 = vpop.permute.xlu0 %992
      %996 = vset.pattern.permute.xlu0 0
      %997 = vperm.xlu0 %996, %v989
      %v998 = vpop.permute.xlu0 %997
      %v1000 = vadd.f32 %v984, %v993
      %v1001 = vadd.f32 %v985, %v993
      %v1002 = vadd.f32 %v986, %v998
      %v1003 = vadd.f32 %v987, %v998
      %v1004 = vadd.f32 %v1000, %v1001
      %1005 = vadd.xlane.f32.xlu0 %v1004
      %v1006 = vpop.xlane.xlu0 %1005
      %v1007 = vadd.f32 %v1002, %v1003
      %1008 = vadd.xlane.f32.xlu0 %v1007
      %v1009 = vpop.xlane.xlu0 %1008
      %v1010 = vrcp.pop 256.0
      %v1011 = vmul.f32 %v1006, %v1010
      %v1012 = vmul.f32 %v1009, %v1010
      %v1013 = vld [vmem:[%s5] sm:$0xff]
      %v1014 = vld [vmem:[%s5 + $0x8] sm:$0xff]
      %v1015 = vmul.f32 %v1013, %v1011
      %v1016 = vmul.f32 %v1014, %v1012
      %v1017 = vsel %vm411, %v1015, 0.0
      %v1018 = vsel %vm411, %v1016, 0.0
      %v1019 = vadd.f32 %v1017, %v1018
      %v1020 = vrot.slane %v1019, 4
      %v1021 = vadd.f32 %v1019, %v1020
      %v1022 = vrot.slane %v1021, 2
      %v1023 = vadd.f32 %v1021, %v1022
      %v1024 = vrot.slane %v1023, 1
      %v1025 = vadd.f32 %v1023, %v1024
      %v1026 = vld [vmem:[%s6] sm:$0x1]
      %v1027 = vadd.f32 %v1025, %v1026
      %v1028 = vmax.f32 %v1027, 0.0
      %v1029 = vld [vmem:[%s7] sm:$0xff]
      %v1030 = vld [vmem:[%s7 + $0x8] sm:$0xff]
      %v1031 = vlaneseq
      %v1032 = vshrl.u32 %v1031, 7
      %v1033 = vsub.s32 0, %v1032
      %v1034 = vrot.slane %v1028, %v1033
      %v1035 = vmul.f32 %v1029, %v1034
      %v1036 = vmul.f32 %v1030, %v1034
      %v1037 = vsel %vm411, %v1035, 0.0
      %1038 = vadd.xlane.f32.xlu0 %v1037
      %v1039 = vpop.xlane.xlu0 %1038
      %v1040 = vsel %vm411, %v1036, 0.0
      %1041 = vadd.xlane.f32.xlu0 %v1040
      %v1042 = vpop.xlane.xlu0 %1041
      %v1043 = vld [vmem:[%s8] sm:$0xff]
      %v1044 = vld [vmem:[%s8 + $0x8] sm:$0xff]
      %v1045 = vadd.f32 %v1039, %v1043
      %v1046 = vadd.f32 %v1042, %v1044
      %v1047 = vadd.f32 %v1045, 3.0
      %v1048 = vadd.f32 %v1046, 3.0
      %v1049 = vmax.f32 %v1047, 0.0
      %v1050 = vmax.f32 %v1048, 0.0
      %v1051 = vmin.f32 %v1049, 6.0
      %v1052 = vmin.f32 %v1050, 6.0
      %v1053 = vmul.f32 %v1051, 0.16666667
      %v1054 = vmul.f32 %v1052, 0.16666667
      %1056 = vset.pattern.permute.xlu0 0
      %1057 = vperm.xlu0 %1056, %v1053
      %v1058 = vpop.permute.xlu0 %1057
      %1061 = vset.pattern.permute.xlu0 0
      %1062 = vperm.xlu0 %1061, %v1054
      %v1063 = vpop.permute.xlu0 %1062
      %v1065 = vmul.f32 %v1000, %v1058
      %v1066 = vmul.f32 %v1001, %v1058
      %v1067 = vmul.f32 %v1002, %v1063
      %v1068 = vmul.f32 %v1003, %v1063
      %v1069 = vadd.f32 %v1065, 3.0
      %v1070 = vadd.f32 %v1066, 3.0
      %v1071 = vadd.f32 %v1067, 3.0
      %v1072 = vadd.f32 %v1068, 3.0
      %v1073 = vmax.f32 %v1069, 0.0
      %v1074 = vmax.f32 %v1070, 0.0
      %v1075 = vmax.f32 %v1071, 0.0
      %v1076 = vmax.f32 %v1072, 0.0
      %v1077 = vmin.f32 %v1073, 6.0
      %v1078 = vmin.f32 %v1074, 6.0
      %v1079 = vmin.f32 %v1075, 6.0
      %v1080 = vmin.f32 %v1076, 6.0
      %v1081 = vmul.f32 %v1077, 0.16666667
      %v1082 = vmul.f32 %v1078, 0.16666667
      %v1083 = vmul.f32 %v1079, 0.16666667
      %v1084 = vmul.f32 %v1080, 0.16666667
      %v1085 = vmul.f32 %v1065, %v1081
      %v1086 = vmul.f32 %v1066, %v1082
      %v1087 = vmul.f32 %v1067, %v1083
      %v1088 = vmul.f32 %v1068, %v1084
      %v1089 = vld [vmem:[%s9] sm:$0xf]
      %v1090 = vpack.c.bf16 %v1087, %v1085
      %v1091 = vpack.c.bf16 %v1088, %v1086
      %v1092 = vld [vmem:[%s10] sm:$0xff]
      %1094 = vset.pattern.permute.xlu0 0
      %1095 = vperm.xlu0 %1094, %v1092
      %v1096 = vpop.permute.xlu0 %1095
      %vm1098 = vcmask 130048
      %v1100 = vsel %vm1098, %v1089, 0
      %1102 = vmatprep.subr.bf16.mxu0 %v1091
      %1103 = vmatpush1.bf16.msra.mxu0 %v1090
      %1104 = vmatprep.subr.bf16.mxu0 0
      %1105 = vmatpush1.bf16.msra.mxu0 0
      %1106 = vmatprep.subr.bf16.mxu0 0
      %1107 = vmatpush1.bf16.msra.mxu0 0
      %1108 = vmatprep.subr.bf16.mxu0 0
      %1109 = vmatpush1.bf16.msra.mxu0 0
      %1110 = vmatprep.subr.bf16.mxu0 0
      %1111 = vmatpush1.bf16.msra.mxu0 0
      %1112 = vmatprep.subr.bf16.mxu0 0
      %1113 = vmatpush1.bf16.msra.mxu0 0
      %1114 = vmatprep.subr.bf16.mxu0 0
      %1115 = vmatpush1.bf16.msra.mxu0 0
      %1116 = vmatprep.subr.bf16.mxu0 0
      %1117 = vmatpush1.bf16.msra.mxu0 0
      %1118 = vmatprep.subr.bf16.mxu0 0
      %1119 = vmatpush1.bf16.msra.mxu0 0
      %1120 = vmatprep.subr.bf16.mxu0 0
      %1121 = vmatpush1.bf16.msra.mxu0 0
      %1122 = vmatprep.subr.bf16.mxu0 0
      %1123 = vmatpush1.bf16.msra.mxu0 0
      %1124 = vmatprep.subr.bf16.mxu0 0
      %1125 = vmatpush1.bf16.msra.mxu0 0
      %1126 = vmatprep.subr.bf16.mxu0 0
      %1127 = vmatpush1.bf16.msra.mxu0 0
      %1128 = vmatprep.subr.bf16.mxu0 0
      %1129 = vmatpush1.bf16.msra.mxu0 0
      %1130 = vmatprep.subr.bf16.mxu0 0
      %1131 = vmatpush1.bf16.msra.mxu0 0
      %1132 = vmatprep.subr.bf16.mxu0 0
      %1133 = vmatpush1.bf16.msra.mxu0 0
      %1134 = vmatprep.mubr.bf16.mxu0 0
      %1135 = vmatmul.mubr.bf16.gmra.mrb[0].mxu0 %v1100
      %v1136 = vpop.f32.mrb[0].mxu0
      %v1137 = vadd.f32 %v1096, %v1136
      %v1138 = vpop.f32.mrb[0].mxu0
      %v1139 = vadd.f32 %v1096, %v1138
      %v1140 = vpop.f32.mrb[0].mxu0
      %v1141 = vpop.f32.mrb[0].mxu0
      %1142 = vdwg.mxu0
      %v1143 = vadd.f32 %v1137, %v388
      %v1144 = vadd.f32 %v1139, %v389
      %1145 = vst [vmem:[%s386] sm:$0xff] %v1143
      %1146 = vst [vmem:[%s386 + $0x8] sm:$0xff] %v1144
      %p1147 = scmp.lt.s32.totalorder %s22, 1
      %s1148 = scalar_select %p1147, %s22, 1
      %s1149 = smul.addr %s1148, 2
      %s1150 = smul.addr %s1149, 8
      %s1151 = scalar_lea.vmem %s11, %s1150
      // Predicated region
      $region65: #{inverted_residual_forward.1} parent=63 // pred_check
        %p1152 = pneg %p276
      $region66: #{inverted_residual_forward.1} parent=63 // pred_check_branch
        %1154 = sbr.rel (%p1152) target = $region68
      $region67: #{inverted_residual_forward.1} parent=63 // pred_region
        _
      $region68: #{inverted_residual_forward.1} parent=63 // pred_fallthru
        _
    $region64: #{inverted_residual_forward.1} parent=5 // pred_fallthru
      _
    %p1155 = scmp.le.s32.totalorder 2, %s17
    // Predicated region
    $region69: #{inverted_residual_forward.1} parent=5 // pred_check
      %p1156 = pneg %p1155
    $region70: #{inverted_residual_forward.1} parent=5 // pred_check_branch
      %1158 = sbr.rel (%p1156) target = $region72
    $region71: #{inverted_residual_forward.1} parent=5 // pred_region
      %s1159 = ssub.s32 %s17, 2
      // Predicated region
      $region73: #{inverted_residual_forward.1} parent=71 // pred_check
        %p1160 = pneg %p282
      $region74: #{inverted_residual_forward.1} parent=71 // pred_check_branch
        %1162 = sbr.rel (%p1160) target = $region76
      $region75: #{inverted_residual_forward.1} parent=71 // pred_region
        %p1163 = scmp.lt.s32.totalorder %s23, 1
        %s1164 = scalar_select %p1163, %s23, 1
        %s1165 = smul.addr %s1164, 2
        %s1166 = smul.addr %s1165, 8
        %s1167 = scalar_lea.vmem %s11, %s1166
      $region76: #{inverted_residual_forward.1} parent=71 // pred_fallthru
        _
    $region72: #{inverted_residual_forward.1} parent=5 // pred_fallthru
      _
  $region6: #{inverted_residual_forward.1} parent=0 // loop_footer
    %s21 = sadd.s32 1, %s17
  $region7: #{inverted_residual_forward.1} parent=0 // loop_footer_branch
    %16 = sbr.rel target = $region3
  $region8: #{inverted_residual_forward.1} parent=0 // loop_exit
    _

</llo_original>
